<compile_context>
chip_gen: v5e
topology: v5e:2x2
jax: 0.10.0
libtpu: 0.0.40
codegen_flags: <defaults>
</compile_context>

<pallas_src>
import functools
import math

import jax
import jax.numpy as jnp
from jax.experimental import pallas as pl
from jax.experimental.pallas import tpu as pltpu


def _pick_tile_h(ho, wo, k_total, cout, in_itemsize, out_itemsize,
                 budget_bytes):
    """Largest divisor tile_h of ho such that the output slab (tile_h*wo) is
    lane-dense (multiple of 128 lanes) -- or tile_h == ho as the legal
    fallback -- and the tile-dependent VMEM working set fits `budget_bytes`.
    """
    def legal(th):
        return ho % th == 0 and ((th * wo) % 128 == 0 or th == ho)

    def tile_bytes(th):
        s = th * wo
        return (k_total * s * in_itemsize        # im2col patch matrix
                + cout * s * 4                   # f32 accumulator
                + 2 * cout * s * out_itemsize)   # double-buffered output block

    for th in range(ho, 0, -1):
        if legal(th) and tile_bytes(th) <= budget_bytes:
            return th
    for th in range(1, ho + 1):                  # nothing fits: smallest legal
        if legal(th):
            return th
    return ho


def _conv_bn_relu_kernel(x_ref, w_ref, b_ref, o_ref, *,
                         stride, dilation, kh_sz, kw_sz, tile_h, wo,
                         apply_relu):
    # x_ref: (1, Cin, Hp, Wp)      channel-major padded image of one batch
    #                              element; resident across the row-tile axis.
    # w_ref: (Cout, KH*KW*Cin)     BN-folded weights, already in compute dtype.
    # b_ref: (Cout, 1)             folded BN (+ conv) bias, f32.
    # o_ref: (1, Cout, tile_h*Wo)  lane-dense output slab for this row tile.
    cin = x_ref.shape[1]
    t = pl.program_id(1)

    tile_h_in = (tile_h - 1) * stride + (kh_sz - 1) * dilation + 1
    row_off = pl.multiple_of(t * (tile_h * stride), tile_h * stride)
    xw = x_ref[0, :, pl.ds(row_off, tile_h_in), :]          # (Cin, tile_h_in, Wp)

    # im2col in (KH*KW*Cin, spatial) orientation: spatial on lanes, so each
    # tap is a dense block and the concat is a cheap major-axis append.
    taps = []
    for kh in range(kh_sz):
        for kw in range(kw_sz):
            h0 = kh * dilation
            w0 = kw * dilation
            # TODO(synk): stride > 1 uses a strided value-slice; express the
            # stride at the ref/DMA level once that path is exercised on HW.
            taps.append(jax.lax.slice(
                xw,
                (0, h0, w0),
                (cin,
                 h0 + (tile_h - 1) * stride + 1,
                 w0 + (wo - 1) * stride + 1),
                (1, stride, stride)))                        # (Cin, tile_h, Wo)
    patches = jnp.concatenate(taps, axis=0)                  # (KH*KW*Cin, tile_h, Wo)
    patches = patches.reshape(kh_sz * kw_sz * cin, tile_h * wo)

    # Single MXU matmul, K = KH*KW*Cin, f32 accumulation.
    acc = jnp.dot(w_ref[...], patches,
                  preferred_element_type=jnp.float32)        # (Cout, tile_h*Wo)

    out = acc + b_ref[...]                                   # f32 epilogue
    if apply_relu:
        out = jnp.maximum(out, 0.0)
    o_ref[...] = out[None].astype(o_ref.dtype)


def conv_bn_relu(x_nchw, w_oihw, bn_gamma, bn_beta, bn_mean, bn_var,
                 conv_bias=None, *, stride=1, dilation=1, relu_type="relu",
                 bn_eps=1e-5, compute_dtype=jnp.bfloat16,
                 vmem_tile_budget_bytes=8 * 1024 * 1024):
    """ConvBNReLU forward (PyTorch NCHW in / NCHW out), inference-mode BN.

    x_nchw: (N, Cin, H, W), w_oihw: (Cout, Cin, KH, KW).
    compute_dtype=jnp.bfloat16 (default) uses the bf16 MXU path with f32
    accumulation; pass compute_dtype=None for the bit-accurate f32 path.
    """
    assert relu_type in ("relu", "none")
    n, cin, h, w = x_nchw.shape
    cout, cin_w, kh, kw = w_oihw.shape
    assert cin == cin_w, "groups != 1 not supported"  # TODO(synk): grouped conv
    padding = (kh - 1) * dilation // 2                # matches the PyTorch module

    in_dtype = x_nchw.dtype
    cd = in_dtype if compute_dtype is None else compute_dtype

    # ---- fold inference-mode BN into weights + per-channel bias -------------
    scale = (bn_gamma.astype(jnp.float32)
             / jnp.sqrt(bn_var.astype(jnp.float32) + bn_eps))          # (Cout,)
    bias = bn_beta.astype(jnp.float32) - bn_mean.astype(jnp.float32) * scale
    if conv_bias is not None:
        bias = bias + conv_bias.astype(jnp.float32) * scale
    # OIHW -> (Cout, KH, KW, Cin), fold scale, flatten; cast hoisted to wrapper.
    w_mat = (jnp.transpose(w_oihw, (0, 2, 3, 1)).astype(jnp.float32)
             * scale[:, None, None, None])
    w_mat = w_mat.reshape(cout, kh * kw * cin).astype(cd)
    bias_col = bias.reshape(cout, 1)

    # ---- activations: keep NCHW (no transpose pass); pad H/W; cast once -----
    x_pad = jnp.pad(x_nchw, ((0, 0), (0, 0),
                             (padding, padding), (padding, padding))).astype(cd)
    hp, wp = x_pad.shape[2], x_pad.shape[3]
    ho = (h + 2 * padding - dilation * (kh - 1) - 1) // stride + 1
    wo = (w + 2 * padding - dilation * (kw - 1) - 1) // stride + 1

    tile_h = _pick_tile_h(ho, wo, kh * kw * cin, cout,
                          jnp.dtype(cd).itemsize, jnp.dtype(in_dtype).itemsize,
                          vmem_tile_budget_bytes)
    n_t = ho // tile_h

    kernel = functools.partial(
        _conv_bn_relu_kernel, stride=stride, dilation=dilation,
        kh_sz=kh, kw_sz=kw, tile_h=tile_h, wo=wo,
        apply_relu=(relu_type == "relu"))

    out_flat = pl.pallas_call(
        kernel,
        out_shape=jax.ShapeDtypeStruct((n, cout, ho * wo), in_dtype),
        grid=(n, n_t),
        in_specs=[
            pl.BlockSpec((1, cin, hp, wp), lambda b, t: (b, 0, 0, 0)),
            pl.BlockSpec((cout, kh * kw * cin), lambda b, t: (0, 0)),
            pl.BlockSpec((cout, 1), lambda b, t: (0, 0)),
        ],
        out_specs=pl.BlockSpec((1, cout, tile_h * wo), lambda b, t: (b, 0, t)),
        compiler_params=pltpu.CompilerParams(
            dimension_semantics=("parallel", "parallel"),
            vmem_limit_bytes=32 * 1024 * 1024),
    )(x_pad, w_mat, bias_col)

    # Free (row-major) reshape back to NCHW.
    return out_flat.reshape(n, cout, ho, wo)


def _reference(x, w, gamma, beta, mean, var, stride, dilation, eps=1e-5):
    k = w.shape[2]
    pad = (k - 1) * dilation // 2
    y = jax.lax.conv_general_dilated(
        x, w, window_strides=(stride, stride),
        padding=((pad, pad), (pad, pad)), rhs_dilation=(dilation, dilation),
        dimension_numbers=("NCHW", "OIHW", "NCHW"))
    y = ((y - mean[None, :, None, None])
         / jnp.sqrt(var + eps)[None, :, None, None]
         * gamma[None, :, None, None] + beta[None, :, None, None])
    return jnp.maximum(y, 0.0)


if __name__ == "__main__":
    # Module config (small): input_size=16, in_channels=4, out_channels=8,
    # kernel_size=3, stride=1, dilation=1, bias=False, relu_type='relu', bn_type='BN'.
    N, Cin, H, W = 2, 4, 16, 16
    Cout, K, stride, dilation = 8, 3, 1, 1

    key = jax.random.PRNGKey(0)
    kx, kwt, kx2 = jax.random.split(key, 3)
    x_nchw = jax.random.normal(kx, (N, Cin, H, W), dtype=jnp.float32)

    # kaiming_normal_(mode='fan_out', nonlinearity='relu'): std = sqrt(2 / fan_out).
    fan_out = Cout * K * K
    w_oihw = (jax.random.normal(kwt, (Cout, Cin, K, K), dtype=jnp.float32)
              * math.sqrt(2.0 / fan_out))

    # BatchNorm2d defaults (inference semantics).
    bn_gamma = jnp.ones((Cout,), jnp.float32)
    bn_beta = jnp.zeros((Cout,), jnp.float32)
    bn_mean = jnp.zeros((Cout,), jnp.float32)
    bn_var = jnp.ones((Cout,), jnp.float32)

    ref = _reference(x_nchw, w_oihw, bn_gamma, bn_beta, bn_mean, bn_var,
                     stride, dilation)

    # 1) bit-accurate f32 path.
    out_f32 = conv_bn_relu(x_nchw, w_oihw, bn_gamma, bn_beta, bn_mean, bn_var,
                           conv_bias=None, stride=stride, dilation=dilation,
                           relu_type="relu", compute_dtype=None)
    out_f32 = jax.block_until_ready(out_f32)
    assert out_f32.shape == ref.shape, (out_f32.shape, ref.shape)
    assert jnp.allclose(out_f32, ref, atol=1e-4, rtol=1e-4), "mismatch (f32 path)"

    # 2) default bf16 MXU path (f32 accumulation); looser tolerance.
    out_bf16 = conv_bn_relu(x_nchw, w_oihw, bn_gamma, bn_beta, bn_mean, bn_var,
                            conv_bias=None, stride=stride, dilation=dilation,
                            relu_type="relu")
    out_bf16 = jax.block_until_ready(out_bf16)
    assert jnp.allclose(out_bf16, ref, atol=1e-1, rtol=1e-1), "mismatch (bf16 path)"

    # 3) non-128-aligned spatial size (12x12): exercises the tile_h == Ho
    #    masked-store fallback of the output slab.
    x_small = jax.random.normal(kx2, (N, Cin, 12, 12), dtype=jnp.float32)
    ref_small = _reference(x_small, w_oihw, bn_gamma, bn_beta, bn_mean, bn_var,
                           stride, dilation)
    out_small = conv_bn_relu(x_small, w_oihw, bn_gamma, bn_beta, bn_mean, bn_var,
                             conv_bias=None, stride=stride, dilation=dilation,
                             relu_type="relu", compute_dtype=None)
    out_small = jax.block_until_ready(out_small)
    assert out_small.shape == ref_small.shape
    assert jnp.allclose(out_small, ref_small, atol=1e-4, rtol=1e-4), \
        "mismatch (non-aligned spatial)"

    print("KERNEL_OK")
</pallas_src>

<mosaic_0001>
module attributes {stable_mosaic.version = 11 : i64} {
  func.func @_conv_bn_relu_kernel(%arg0: i32, %arg1: i32, %arg2: memref<1x4x18x18xf32, #tpu.memory_space<vmem>>, %arg3: memref<8x36xf32, #tpu.memory_space<vmem>>, %arg4: memref<8x1xf32, #tpu.memory_space<vmem>>, %arg5: memref<1x8x256xf32, #tpu.memory_space<vmem>>) attributes {dimension_semantics = [#tpu.dimension_semantics<parallel>, #tpu.dimension_semantics<parallel>], iteration_bounds = array<i64: 2, 1>, scalar_prefetch = 0 : i64, scratch_operands = 0 : i64, tpu.core_type = #tpu.core_type<tc>, window_params = [{transform_indices = @transform_0, window_bounds = array<i64: 1, 4, 18, 18>}, {pipeline_mode = #tpu.pipeline_mode<synchronous>, transform_indices = @transform_1, window_bounds = array<i64: 8, 36>}, {pipeline_mode = #tpu.pipeline_mode<synchronous>, transform_indices = @transform_2, window_bounds = array<i64: 8, 1>}, {transform_indices = @transform_3, window_bounds = array<i64: 1, 8, 256>}]} {
    %c16_i32 = arith.constant 16 : i32
    %0 = arith.muli %arg1, %c16_i32 : i32
    %1 = tpu.assume_multiple %0, 16 : i32
    %c0 = arith.constant 0 : index
    %c0_0 = arith.constant 0 : index
    %2 = arith.index_cast %1 : i32 to index
    %c0_1 = arith.constant 0 : index
    %3 = vector.load %arg2[%c0, %c0_0, %2, %c0_1] : memref<1x4x18x18xf32, #tpu.memory_space<vmem>>, vector<1x4x18x18xf32>
    %4 = vector.shape_cast %3 : vector<1x4x18x18xf32> to vector<4x18x18xf32>
    %5 = vector.extract_strided_slice %4 {offsets = [0, 0, 0], sizes = [4, 16, 16], strides = [1, 1, 1]} : vector<4x18x18xf32> to vector<4x16x16xf32>
    %6 = vector.extract_strided_slice %4 {offsets = [0, 0, 1], sizes = [4, 16, 16], strides = [1, 1, 1]} : vector<4x18x18xf32> to vector<4x16x16xf32>
    %7 = vector.extract_strided_slice %4 {offsets = [0, 0, 2], sizes = [4, 16, 16], strides = [1, 1, 1]} : vector<4x18x18xf32> to vector<4x16x16xf32>
    %8 = vector.extract_strided_slice %4 {offsets = [0, 1, 0], sizes = [4, 16, 16], strides = [1, 1, 1]} : vector<4x18x18xf32> to vector<4x16x16xf32>
    %9 = vector.extract_strided_slice %4 {offsets = [0, 1, 1], sizes = [4, 16, 16], strides = [1, 1, 1]} : vector<4x18x18xf32> to vector<4x16x16xf32>
    %10 = vector.extract_strided_slice %4 {offsets = [0, 1, 2], sizes = [4, 16, 16], strides = [1, 1, 1]} : vector<4x18x18xf32> to vector<4x16x16xf32>
    %11 = vector.extract_strided_slice %4 {offsets = [0, 2, 0], sizes = [4, 16, 16], strides = [1, 1, 1]} : vector<4x18x18xf32> to vector<4x16x16xf32>
    %12 = vector.extract_strided_slice %4 {offsets = [0, 2, 1], sizes = [4, 16, 16], strides = [1, 1, 1]} : vector<4x18x18xf32> to vector<4x16x16xf32>
    %13 = vector.extract_strided_slice %4 {offsets = [0, 2, 2], sizes = [4, 16, 16], strides = [1, 1, 1]} : vector<4x18x18xf32> to vector<4x16x16xf32>
    %14 = tpu.concatenate %5, %6, %7, %8, %9, %10, %11, %12, %13 in 0 : vector<4x16x16xf32>, vector<4x16x16xf32>, vector<4x16x16xf32>, vector<4x16x16xf32>, vector<4x16x16xf32>, vector<4x16x16xf32>, vector<4x16x16xf32>, vector<4x16x16xf32>, vector<4x16x16xf32> -> vector<36x16x16xf32>
    %15 = vector.shape_cast %14 : vector<36x16x16xf32> to vector<36x256xf32>
    %c0_2 = arith.constant 0 : index
    %c0_3 = arith.constant 0 : index
    %16 = vector.load %arg3[%c0_2, %c0_3] : memref<8x36xf32, #tpu.memory_space<vmem>>, vector<8x36xf32>
    %cst = arith.constant dense<0.000000e+00> : vector<8x256xf32>
    %17 = tpu.matmul %16, %15, %cst {dimension_numbers = #tpu.dot_dimension_numbers<[1], [0], [0], [1], [0, 0, 1, 1], [], []>} : vector<8x36xf32>, vector<36x256xf32>, vector<8x256xf32> -> vector<8x256xf32>
    %c0_4 = arith.constant 0 : index
    %c0_5 = arith.constant 0 : index
    %18 = vector.load %arg4[%c0_4, %c0_5] : memref<8x1xf32, #tpu.memory_space<vmem>>, vector<8x1xf32>
    %19 = vector.broadcast %18 : vector<8x1xf32> to vector<8x256xf32>
    %20 = arith.addf %17, %19 : vector<8x256xf32>
    %cst_6 = arith.constant 0.000000e+00 : f32
    %21 = vector.broadcast %cst_6 : f32 to vector<8x256xf32>
    %22 = arith.maximumf %20, %21 : vector<8x256xf32>
    %23 = vector.shape_cast %22 : vector<8x256xf32> to vector<1x8x256xf32>
    %c0_7 = arith.constant 0 : index
    %c0_8 = arith.constant 0 : index
    %c0_9 = arith.constant 0 : index
    %24 = vector.load %arg5[%c0_7, %c0_8, %c0_9] : memref<1x8x256xf32, #tpu.memory_space<vmem>>, vector<1x8x256xf32>
    tpu.vector_store %arg5[%c0_7, %c0_8, %c0_9], %23 {strides = array<i32>} : memref<1x8x256xf32, #tpu.memory_space<vmem>>, vector<1x8x256xf32>,
    return
  }
  func.func @transform_0(%arg0: i32, %arg1: i32) -> (i32, i32, i32, i32) {
    %c0_i32 = arith.constant 0 : i32
    %c0_i32_0 = arith.constant 0 : i32
    %c0_i32_1 = arith.constant 0 : i32
    %c0_i32_2 = arith.constant 0 : i32
    return %arg0, %c0_i32, %c0_i32_0, %c0_i32_1 : i32, i32, i32, i32
  }
  func.func @transform_1(%arg0: i32, %arg1: i32) -> (i32, i32) {
    %c0_i32 = arith.constant 0 : i32
    %c0_i32_0 = arith.constant 0 : i32
    %c0_i32_1 = arith.constant 0 : i32
    return %c0_i32, %c0_i32_0 : i32, i32
  }
  func.func @transform_2(%arg0: i32, %arg1: i32) -> (i32, i32) {
    %c0_i32 = arith.constant 0 : i32
    %c0_i32_0 = arith.constant 0 : i32
    %c0_i32_1 = arith.constant 0 : i32
    return %c0_i32, %c0_i32_0 : i32, i32
  }
  func.func @transform_3(%arg0: i32, %arg1: i32) -> (i32, i32, i32) {
    %c0_i32 = arith.constant 0 : i32
    %c0_i32_0 = arith.constant 0 : i32
    return %arg0, %c0_i32, %arg1 : i32, i32, i32
  }
}

</mosaic_0001>

<llo_original>
// kernel: tpu_custom_call.1
$region0: #{tpu_custom_call.1}
  #allocation0 [shape = 'u32[]', space=smem, size = 0x4, offset = 0x4, fixed_abs, tag = 'smem constant byte address 0x4 - core index']
  #allocation1 [shape = 'u32[72,128]{1,0:T(1,128)}', space=vmem, size = 0x9000, scoped, tag = 'internal scratch']
  %s0 = inlined_call_operand.vmem [shape: f32[2,4,18,18], index: 0, kind: input, shape index: {}]
  %s1 = inlined_call_operand.vmem [shape: f32[8,36], index: 1, kind: input, shape index: {}]
  %s2 = inlined_call_operand.vmem [shape: f32[8,1], index: 2, kind: input, shape index: {}]
  %s3 = inlined_call_operand.hbm [shape: f32[2,8,256], index: 3, kind: output, shape index: {}]
  %s4 = sld [smem:[#allocation0]]
  $region45: #{tpu_custom_call.1} parent=0
    _
  %s6 = ssub.s32 1, %s4
  %s7 = scalar_select 0, %s6, %s4
  $region1: #{tpu_custom_call.1} parent=0
    #allocation2 [shape = 'u8[16384]{0}', space=vmem, size = 0x4000, scoped, tag = 'output window, operand 0']
    #allocation3 [shape = 's32[2]{0}', space=sflag, size = 0x8, scoped, tag = 'scoped memory for tpu_custom_call.1']
    %8 = vsyncpa [#allocation3], 0
    %s9 = scalar_lea.sflag [#allocation3], 1
    %10 = vsyncpa %s9, 0
    loop: start=0, step=1, limit=4
    $region2: #{tpu_custom_call.1} parent=1 // loop_pre_header
      _
    $region3: #{tpu_custom_call.1} parent=1 // loop_header
      %s12 = sphi 0, %s16
      %p13 = scmp.ge.s32.totalorder %s12, 4
      %s19 = sphi 0, %s31
      %s20 = sphi 0, %s27
      %s21 = sphi 0, %s19
      %s22 = sphi 0, %s20
      %s23 = sphi 0, %s21
      %s24 = sphi 0, %s22
      %s34 = sphi 0, %s36
      %s37 = sphi 0, %s34
      %s38 = sphi 0, %s37
      %s54 = sphi 0, %s38
      %s58 = sphi 0, %s58
      %s60 = sphi 0, %s58
      %s61 = sphi 0, %s60
      %s75 = sphi 0, %s61
      %s79 = sphi 0, %s79
      %s81 = sphi 0, %s79
      %s82 = sphi 0, %s81
      %s96 = sphi 0, %s82
      %s104 = sphi 0, %s106
      %s107 = sphi 0, %s104
      %s108 = sphi 0, %s107
      %s124 = sphi 0, %s108
    $region4: #{tpu_custom_call.1} parent=1 // loop_header_branch
      %15 = sbr.rel (%p13) target = $region8
    $region5: #{tpu_custom_call.1} parent=1 // loop_body
      %s17 = ssub.s32 %s12, 1
      %s18 = ssub.s32 %s12, 2
      %s25 = sadd.s32 1, %s20
      %p26 = scmp.ge.s32.totalorder %s25, 1
      %s27 = scalar_select %p26, 0, %s25
      %s28 = sadd.s32 1, %s19
      %s29 = scalar_select %p26, %s28, %s19
      %p30 = scmp.ge.s32.totalorder %s29, 2
      %s31 = scalar_select %p30, 0, %s29
      %s32 = ssub.s32 %s19, %s31
      %p33 = scmp.eq.s32.totalorder %s32, 0
      %s35 = sadd.s32 %s34, 1
      %s36 = scalar_select %p33, %s34, %s35
      %p39 = pneg %p33
      %p40 = scmp.eq.s32.totalorder %s12, 1
      %p41 = por %p39, %p40
      %p42 = scmp.ne.s32.totalorder %s34, %s37
      %p43 = scmp.eq.s32.totalorder %s12, 0
      %p44 = por %p42, %p43
      %p45 = scmp.ne.s32.totalorder %s34, %s37
      %p46 = scmp.eq.s32.totalorder %s17, 1
      %p47 = por %p45, %p46
      %p48 = scmp.ne.s32.totalorder %s37, %s38
      %p49 = scmp.eq.s32.totalorder %s17, 0
      %p50 = por %p48, %p49
      %p51 = scmp.ne.s32.totalorder %s37, %s38
      %p52 = scmp.eq.s32.totalorder %s18, 1
      %p53 = por %p51, %p52
      %p55 = scmp.ne.s32.totalorder %s38, %s54
      %p56 = scmp.eq.s32.totalorder %s18, 0
      %p57 = por %p55, %p56
      %s59 = sadd.s32 %s58, 1
      %p62 = scmp.eq.s32.totalorder %s12, 1
      %p63 = scmp.ne.s32.totalorder %s58, %s60
      %p64 = scmp.eq.s32.totalorder %s12, 0
      %p65 = por %p63, %p64
      %p66 = scmp.ne.s32.totalorder %s58, %s60
      %p67 = scmp.eq.s32.totalorder %s17, 1
      %p68 = por %p66, %p67
      %p69 = scmp.ne.s32.totalorder %s60, %s61
      %p70 = scmp.eq.s32.totalorder %s17, 0
      %p71 = por %p69, %p70
      %p72 = scmp.ne.s32.totalorder %s60, %s61
      %p73 = scmp.eq.s32.totalorder %s18, 1
      %p74 = por %p72, %p73
      %p76 = scmp.ne.s32.totalorder %s61, %s75
      %p77 = scmp.eq.s32.totalorder %s18, 0
      %p78 = por %p76, %p77
      %s80 = sadd.s32 %s79, 1
      %p83 = scmp.eq.s32.totalorder %s12, 1
      %p84 = scmp.ne.s32.totalorder %s79, %s81
      %p85 = scmp.eq.s32.totalorder %s12, 0
      %p86 = por %p84, %p85
      %p87 = scmp.ne.s32.totalorder %s79, %s81
      %p88 = scmp.eq.s32.totalorder %s17, 1
      %p89 = por %p87, %p88
      %p90 = scmp.ne.s32.totalorder %s81, %s82
      %p91 = scmp.eq.s32.totalorder %s17, 0
      %p92 = por %p90, %p91
      %p93 = scmp.ne.s32.totalorder %s81, %s82
      %p94 = scmp.eq.s32.totalorder %s18, 1
      %p95 = por %p93, %p94
      %p97 = scmp.ne.s32.totalorder %s82, %s96
      %p98 = scmp.eq.s32.totalorder %s18, 0
      %p99 = por %p97, %p98
      %s100 = ssub.s32 %s19, %s31
      %s101 = ssub.s32 %s20, %s27
      %s102 = sor.u32 %s100, %s101
      %p103 = scmp.eq.s32.totalorder %s102, 0
      %s105 = sadd.s32 %s104, 1
      %s106 = scalar_select %p103, %s104, %s105
      %p109 = pneg %p103
      %p110 = scmp.eq.s32.totalorder %s12, 1
      %p111 = por %p109, %p110
      %p112 = scmp.ne.s32.totalorder %s104, %s107
      %p113 = scmp.eq.s32.totalorder %s12, 0
      %p114 = por %p112, %p113
      %p115 = scmp.ne.s32.totalorder %s104, %s107
      %p116 = scmp.eq.s32.totalorder %s17, 1
      %p117 = por %p115, %p116
      %p118 = scmp.ne.s32.totalorder %s107, %s108
      %p119 = scmp.eq.s32.totalorder %s17, 0
      %p120 = por %p118, %p119
      %p121 = scmp.ne.s32.totalorder %s107, %s108
      %p122 = scmp.eq.s32.totalorder %s18, 1
      %p123 = por %p121, %p122
      %p125 = scmp.ne.s32.totalorder %s108, %s124
      %p126 = scmp.eq.s32.totalorder %s18, 0
      %p127 = por %p125, %p126
      %p128 = scmp.le.s32.totalorder 1, %s12
      %p129 = scmp.lt.s32.totalorder %s12, 3
      %p130 = pnand %p128, %p129
      %p131 = pneg %p130
      // Predicated region
      $region9: #{tpu_custom_call.1} parent=5 // pred_check
        _
      $region10: #{tpu_custom_call.1} parent=5 // pred_check_branch
        %133 = sbr.rel (%p130) target = $region12
      $region11: #{tpu_custom_call.1} parent=5 // pred_region
        %s134 = ssub.s32 %s12, 1
        // Predicated region
        $region13: #{tpu_custom_call.1} parent=11 // pred_check
          %p135 = pneg %p71
        $region14: #{tpu_custom_call.1} parent=11 // pred_check_branch
          %137 = sbr.rel (%p135) target = $region16
        $region15: #{tpu_custom_call.1} parent=11 // pred_region
          _
        $region16: #{tpu_custom_call.1} parent=11 // pred_fallthru
          _
        // Predicated region
        $region17: #{tpu_custom_call.1} parent=11 // pred_check
          %p138 = pneg %p92
        $region18: #{tpu_custom_call.1} parent=11 // pred_check_branch
          %140 = sbr.rel (%p138) target = $region20
        $region19: #{tpu_custom_call.1} parent=11 // pred_region
          _
        $region20: #{tpu_custom_call.1} parent=11 // pred_fallthru
          _
      $region12: #{tpu_custom_call.1} parent=5 // pred_fallthru
        _
      %p141 = scmp.lt.s32.totalorder %s12, 2
      // Predicated region
      $region21: #{tpu_custom_call.1} parent=5 // pred_check
        %p142 = pneg %p141
      $region22: #{tpu_custom_call.1} parent=5 // pred_check_branch
        %144 = sbr.rel (%p142) target = $region24
      $region23: #{tpu_custom_call.1} parent=5 // pred_region
        // Predicated region
        $region25: #{tpu_custom_call.1} parent=23 // pred_check
          %p145 = pneg %p44
        $region26: #{tpu_custom_call.1} parent=23 // pred_check_branch
          %147 = sbr.rel (%p145) target = $region28
        $region27: #{tpu_custom_call.1} parent=23 // pred_region
          %p148 = scmp.lt.s32.totalorder %s19, 1
          %s149 = scalar_select %p148, %s19, 1
          %s150 = smul.addr %s149, 12
          %s151 = smul.addr %s150, 8
          %s152 = scalar_lea.vmem %s0, %s151
        $region28: #{tpu_custom_call.1} parent=23 // pred_fallthru
          _
      $region24: #{tpu_custom_call.1} parent=5 // pred_fallthru
        _
      %p153 = scmp.le.s32.totalorder 1, %s12
      %p154 = scmp.lt.s32.totalorder %s12, 3
      %p155 = pnand %p153, %p154
      %p156 = pneg %p155
      // Predicated region
      $region29: #{tpu_custom_call.1} parent=5 // pred_check
        _
      $region30: #{tpu_custom_call.1} parent=5 // pred_check_branch
        %158 = sbr.rel (%p155) target = $region32
      $region31: #{tpu_custom_call.1} parent=5 // pred_region
        %s159 = ssub.s32 %s12, 1
        %p160 = scmp.lt.s32.totalorder %s21, 1
        %s161 = scalar_select %p160, %s21, 1
        %s162 = smul.addr %s161, 12
        %s163 = smul.addr %s162, 8
        %s164 = scalar_lea.vmem %s0, %s163
        %p165 = pneg %p50
        %p166 = pneg %p47
        %p167 = pneg %p71
        %p168 = pneg %p68
        %p169 = pneg %p92
        %p170 = pneg %p89
        %p171 = pneg %p120
        %p172 = pneg %p117
        %s173 = sand.u32 %s107, 1
        %s174 = scalar_lea.sflag [#allocation3], %s173
        %s175 = sand.u32 %s107, 1
        %s176 = smul.addr %s175, 16
        %s177 = scalar_lea.vmem [#allocation2], %s176
        %p178 = scmp.lt.s32.totalorder %s21, 1
        %s179 = scalar_select %p178, %s21, 1
        %s180 = smul.addr %s179, 12
        %s181 = smul.addr %s180, 8
        %s182 = scalar_lea.vmem %s0, %s181
        %s183 = smul.u32 2, %s22
        %s184 = smul.u32 %s22, 16
        %s185 = scalar_lea.vmem %s182, %s184
        %v186 = vld [vmem:[%s185] sm:$0xff]
        %v187 = vld [vmem:[%s185 + $0x8] sm:$0xff]
        %v188 = vld [vmem:[%s185 + $0x10] sm:$0x3]
        %v189 = vld [vmem:[%s185 + $0x18] sm:$0xff]
        %v190 = vld [vmem:[%s185 + $0x20] sm:$0xff]
        %v191 = vld [vmem:[%s185 + $0x28] sm:$0x3]
        %v192 = vld [vmem:[%s185 + $0x30] sm:$0xff]
        %v193 = vld [vmem:[%s185 + $0x38] sm:$0xff]
        %v194 = vld [vmem:[%s185 + $0x40] sm:$0x3]
        %v195 = vld [vmem:[%s185 + $0x48] sm:$0xff]
        %v196 = vld [vmem:[%s185 + $0x50] sm:$0xff]
        %v197 = vld [vmem:[%s185 + $0x58] sm:$0x3]
        %206 = vrot.lane.b32.xlu0 %v186, 127
        %v207 = vpop.permute.xlu0 %206
        %208 = vrot.lane.b32.xlu0 %v187, 127
        %v209 = vpop.permute.xlu0 %208
        %210 = vrot.lane.b32.xlu0 %v189, 127
        %v211 = vpop.permute.xlu0 %210
        %212 = vrot.lane.b32.xlu0 %v190, 127
        %v213 = vpop.permute.xlu0 %212
        %214 = vrot.lane.b32.xlu0 %v192, 127
        %v215 = vpop.permute.xlu0 %214
        %216 = vrot.lane.b32.xlu0 %v193, 127
        %v217 = vpop.permute.xlu0 %216
        %218 = vrot.lane.b32.xlu0 %v195, 127
        %v219 = vpop.permute.xlu0 %218
        %220 = vrot.lane.b32.xlu0 %v196, 127
        %v221 = vpop.permute.xlu0 %220
        %230 = vrot.lane.b32.xlu0 %v186, 126
        %v231 = vpop.permute.xlu0 %230
        %232 = vrot.lane.b32.xlu0 %v187, 126
        %v233 = vpop.permute.xlu0 %232
        %234 = vrot.lane.b32.xlu0 %v189, 126
        %v235 = vpop.permute.xlu0 %234
        %236 = vrot.lane.b32.xlu0 %v190, 126
        %v237 = vpop.permute.xlu0 %236
        %238 = vrot.lane.b32.xlu0 %v192, 126
        %v239 = vpop.permute.xlu0 %238
        %240 = vrot.lane.b32.xlu0 %v193, 126
        %v241 = vpop.permute.xlu0 %240
        %242 = vrot.lane.b32.xlu0 %v195, 126
        %v243 = vpop.permute.xlu0 %242
        %244 = vrot.lane.b32.xlu0 %v196, 126
        %v245 = vpop.permute.xlu0 %244
        %vm258 = vcmask 1046528
        %v259 = vrot.slane %v186, 1
        %v260 = vrot.slane %v187, 1
        %v261 = vsel %vm258, %v259, %v260
        %v262 = vrot.slane %v188, 1
        %v263 = vsel %vm258, %v260, %v262
        %v264 = vrot.slane %v189, 1
        %v265 = vrot.slane %v190, 1
        %v266 = vsel %vm258, %v264, %v265
        %v267 = vrot.slane %v191, 1
        %v268 = vsel %vm258, %v265, %v267
        %v269 = vrot.slane %v192, 1
        %v270 = vrot.slane %v193, 1
        %v271 = vsel %vm258, %v269, %v270
        %v272 = vrot.slane %v194, 1
        %v273 = vsel %vm258, %v270, %v272
        %v274 = vrot.slane %v195, 1
        %v275 = vrot.slane %v196, 1
        %v276 = vsel %vm258, %v274, %v275
        %v277 = vrot.slane %v197, 1
        %v278 = vsel %vm258, %v275, %v277
        %287 = vrot.lane.b32.xlu0 %v261, 127
        %v288 = vpop.permute.xlu0 %287
        %289 = vrot.lane.b32.xlu0 %v263, 127
        %v290 = vpop.permute.xlu0 %289
        %291 = vrot.lane.b32.xlu0 %v266, 127
        %v292 = vpop.permute.xlu0 %291
        %293 = vrot.lane.b32.xlu0 %v268, 127
        %v294 = vpop.permute.xlu0 %293
        %295 = vrot.lane.b32.xlu0 %v271, 127
        %v296 = vpop.permute.xlu0 %295
        %297 = vrot.lane.b32.xlu0 %v273, 127
        %v298 = vpop.permute.xlu0 %297
        %299 = vrot.lane.b32.xlu0 %v276, 127
        %v300 = vpop.permute.xlu0 %299
        %301 = vrot.lane.b32.xlu0 %v278, 127
        %v302 = vpop.permute.xlu0 %301
        %311 = vrot.lane.b32.xlu0 %v261, 126
        %v312 = vpop.permute.xlu0 %311
        %313 = vrot.lane.b32.xlu0 %v263, 126
        %v314 = vpop.permute.xlu0 %313
        %315 = vrot.lane.b32.xlu0 %v266, 126
        %v316 = vpop.permute.xlu0 %315
        %317 = vrot.lane.b32.xlu0 %v268, 126
        %v318 = vpop.permute.xlu0 %317
        %319 = vrot.lane.b32.xlu0 %v271, 126
        %v320 = vpop.permute.xlu0 %319
        %321 = vrot.lane.b32.xlu0 %v273, 126
        %v322 = vpop.permute.xlu0 %321
        %323 = vrot.lane.b32.xlu0 %v276, 126
        %v324 = vpop.permute.xlu0 %323
        %325 = vrot.lane.b32.xlu0 %v278, 126
        %v326 = vpop.permute.xlu0 %325
        %vm335 = vcmask 1045504
        %v336 = vrot.slane %v186, 2
        %v337 = vrot.slane %v187, 2
        %v338 = vsel %vm335, %v336, %v337
        %v339 = vrot.slane %v188, 2
        %v340 = vsel %vm335, %v337, %v339
        %v341 = vrot.slane %v189, 2
        %v342 = vrot.slane %v190, 2
        %v343 = vsel %vm335, %v341, %v342
        %v344 = vrot.slane %v191, 2
        %v345 = vsel %vm335, %v342, %v344
        %v346 = vrot.slane %v192, 2
        %v347 = vrot.slane %v193, 2
        %v348 = vsel %vm335, %v346, %v347
        %v349 = vrot.slane %v194, 2
        %v350 = vsel %vm335, %v347, %v349
        %v351 = vrot.slane %v195, 2
        %v352 = vrot.slane %v196, 2
        %v353 = vsel %vm335, %v351, %v352
        %v354 = vrot.slane %v197, 2
        %v355 = vsel %vm335, %v352, %v354
        %364 = vrot.lane.b32.xlu0 %v338, 127
        %v365 = vpop.permute.xlu0 %364
        %366 = vrot.lane.b32.xlu0 %v340, 127
        %v367 = vpop.permute.xlu0 %366
        %368 = vrot.lane.b32.xlu0 %v343, 127
        %v369 = vpop.permute.xlu0 %368
        %370 = vrot.lane.b32.xlu0 %v345, 127
        %v371 = vpop.permute.xlu0 %370
        %372 = vrot.lane.b32.xlu0 %v348, 127
        %v373 = vpop.permute.xlu0 %372
        %374 = vrot.lane.b32.xlu0 %v350, 127
        %v375 = vpop.permute.xlu0 %374
        %376 = vrot.lane.b32.xlu0 %v353, 127
        %v377 = vpop.permute.xlu0 %376
        %378 = vrot.lane.b32.xlu0 %v355, 127
        %v379 = vpop.permute.xlu0 %378
        %388 = vrot.lane.b32.xlu0 %v338, 126
        %v389 = vpop.permute.xlu0 %388
        %390 = vrot.lane.b32.xlu0 %v340, 126
        %v391 = vpop.permute.xlu0 %390
        %392 = vrot.lane.b32.xlu0 %v343, 126
        %v393 = vpop.permute.xlu0 %392
        %394 = vrot.lane.b32.xlu0 %v345, 126
        %v395 = vpop.permute.xlu0 %394
        %396 = vrot.lane.b32.xlu0 %v348, 126
        %v397 = vpop.permute.xlu0 %396
        %398 = vrot.lane.b32.xlu0 %v350, 126
        %v399 = vpop.permute.xlu0 %398
        %400 = vrot.lane.b32.xlu0 %v353, 126
        %v401 = vpop.permute.xlu0 %400
        %402 = vrot.lane.b32.xlu0 %v355, 126
        %v403 = vpop.permute.xlu0 %402
        %v412 = vrot.slane %v192, 4
        %vm413 = vcmask 1047556
        %v414 = vsel %vm413, %v412, %v186
        %v415 = vrot.slane %v186, 4
        %v416 = vsel %vm413, %v192, %v415
        %v418 = vunpack.c.l.s4 1983009808
        %v419 = vunpack.c.0.s8 %v418
        %v420 = vperm.slane %v414, %v419
        %v422 = vunpack.c.l.s4 1983009808
        %v423 = vunpack.c.0.s8 %v422
        %v424 = vperm.slane %v416, %v423
        %v425 = vrot.slane %v195, 4
        %v426 = vsel %vm413, %v425, %v189
        %v427 = vrot.slane %v189, 4
        %v428 = vsel %vm413, %v195, %v427
        %v430 = vunpack.c.l.s4 1983009808
        %v431 = vunpack.c.0.s8 %v430
        %v432 = vperm.slane %v426, %v431
        %v434 = vunpack.c.l.s4 1983009808
        %v435 = vunpack.c.0.s8 %v434
        %v436 = vperm.slane %v428, %v435
        %v437 = vrot.slane %v215, 4
        %v438 = vsel %vm413, %v437, %v207
        %v439 = vrot.slane %v207, 4
        %v440 = vsel %vm413, %v215, %v439
        %v442 = vunpack.c.l.s4 1983009808
        %v443 = vunpack.c.0.s8 %v442
        %v444 = vperm.slane %v438, %v443
        %v446 = vunpack.c.l.s4 1983009808
        %v447 = vunpack.c.0.s8 %v446
        %v448 = vperm.slane %v440, %v447
        %v449 = vrot.slane %v219, 4
        %v450 = vsel %vm413, %v449, %v211
        %v451 = vrot.slane %v211, 4
        %v452 = vsel %vm413, %v219, %v451
        %v454 = vunpack.c.l.s4 1983009808
        %v455 = vunpack.c.0.s8 %v454
        %v456 = vperm.slane %v450, %v455
        %v458 = vunpack.c.l.s4 1983009808
        %v459 = vunpack.c.0.s8 %v458
        %v460 = vperm.slane %v452, %v459
        %v461 = vrot.slane %v432, 4
        %v462 = vsel %vm413, %v461, %v420
        %v463 = vrot.slane %v420, 4
        %v464 = vsel %vm413, %v432, %v463
        %v466 = vunpack.c.l.s4 1934713408
        %v467 = vunpack.c.0.s8 %v466
        %v468 = vperm.slane %v462, %v467
        %v470 = vunpack.c.l.s4 1934713408
        %v471 = vunpack.c.0.s8 %v470
        %v472 = vperm.slane %v464, %v471
        %v473 = vrot.slane %v436, 4
        %v474 = vsel %vm413, %v473, %v424
        %v475 = vrot.slane %v424, 4
        %v476 = vsel %vm413, %v436, %v475
        %v478 = vunpack.c.l.s4 1934713408
        %v479 = vunpack.c.0.s8 %v478
        %v480 = vperm.slane %v474, %v479
        %v482 = vunpack.c.l.s4 1934713408
        %v483 = vunpack.c.0.s8 %v482
        %v484 = vperm.slane %v476, %v483
        %v485 = vrot.slane %v456, 4
        %v486 = vsel %vm413, %v485, %v444
        %v487 = vrot.slane %v444, 4
        %v488 = vsel %vm413, %v456, %v487
        %v490 = vunpack.c.l.s4 1934713408
        %v491 = vunpack.c.0.s8 %v490
        %v492 = vperm.slane %v486, %v491
        %v494 = vunpack.c.l.s4 1934713408
        %v495 = vunpack.c.0.s8 %v494
        %v496 = vperm.slane %v488, %v495
        %v497 = vrot.slane %v460, 4
        %v498 = vsel %vm413, %v497, %v448
        %v499 = vrot.slane %v448, 4
        %v500 = vsel %vm413, %v460, %v499
        %v502 = vunpack.c.l.s4 1934713408
        %v503 = vunpack.c.0.s8 %v502
        %v504 = vperm.slane %v498, %v503
        %v506 = vunpack.c.l.s4 1934713408
        %v507 = vunpack.c.0.s8 %v506
        %v508 = vperm.slane %v500, %v507
        %v509 = vrot.slane %v492, 4
        %v510 = vsel %vm413, %v509, %v468
        %v511 = vrot.slane %v468, 4
        %v512 = vsel %vm413, %v492, %v511
        %v513 = vrot.slane %v496, 4
        %v514 = vsel %vm413, %v513, %v472
        %v515 = vrot.slane %v472, 4
        %v516 = vsel %vm413, %v496, %v515
        %v517 = vrot.slane %v504, 4
        %v518 = vsel %vm413, %v517, %v480
        %v519 = vrot.slane %v480, 4
        %v520 = vsel %vm413, %v504, %v519
        %v521 = vrot.slane %v508, 4
        %v522 = vsel %vm413, %v521, %v484
        %v523 = vrot.slane %v484, 4
        %v524 = vsel %vm413, %v508, %v523
        %v525 = vrot.slane %v239, 4
        %v526 = vsel %vm413, %v525, %v231
        %v527 = vrot.slane %v231, 4
        %v528 = vsel %vm413, %v239, %v527
        %v530 = vunpack.c.l.s4 1983009808
        %v531 = vunpack.c.0.s8 %v530
        %v532 = vperm.slane %v526, %v531
        %v534 = vunpack.c.l.s4 1983009808
        %v535 = vunpack.c.0.s8 %v534
        %v536 = vperm.slane %v528, %v535
        %v537 = vrot.slane %v243, 4
        %v538 = vsel %vm413, %v537, %v235
        %v539 = vrot.slane %v235, 4
        %v540 = vsel %vm413, %v243, %v539
        %v542 = vunpack.c.l.s4 1983009808
        %v543 = vunpack.c.0.s8 %v542
        %v544 = vperm.slane %v538, %v543
        %v546 = vunpack.c.l.s4 1983009808
        %v547 = vunpack.c.0.s8 %v546
        %v548 = vperm.slane %v540, %v547
        %v549 = vrot.slane %v271, 4
        %v550 = vsel %vm413, %v549, %v261
        %v551 = vrot.slane %v261, 4
        %v552 = vsel %vm413, %v271, %v551
        %v554 = vunpack.c.l.s4 1983009808
        %v555 = vunpack.c.0.s8 %v554
        %v556 = vperm.slane %v550, %v555
        %v558 = vunpack.c.l.s4 1983009808
        %v559 = vunpack.c.0.s8 %v558
        %v560 = vperm.slane %v552, %v559
        %v561 = vrot.slane %v276, 4
        %v562 = vsel %vm413, %v561, %v266
        %v563 = vrot.slane %v266, 4
        %v564 = vsel %vm413, %v276, %v563
        %v566 = vunpack.c.l.s4 1983009808
        %v567 = vunpack.c.0.s8 %v566
        %v568 = vperm.slane %v562, %v567
        %v570 = vunpack.c.l.s4 1983009808
        %v571 = vunpack.c.0.s8 %v570
        %v572 = vperm.slane %v564, %v571
        %v573 = vrot.slane %v544, 4
        %v574 = vsel %vm413, %v573, %v532
        %v575 = vrot.slane %v532, 4
        %v576 = vsel %vm413, %v544, %v575
        %v578 = vunpack.c.l.s4 1934713408
        %v579 = vunpack.c.0.s8 %v578
        %v580 = vperm.slane %v574, %v579
        %v582 = vunpack.c.l.s4 1934713408
        %v583 = vunpack.c.0.s8 %v582
        %v584 = vperm.slane %v576, %v583
        %v585 = vrot.slane %v548, 4
        %v586 = vsel %vm413, %v585, %v536
        %v587 = vrot.slane %v536, 4
        %v588 = vsel %vm413, %v548, %v587
        %v590 = vunpack.c.l.s4 1934713408
        %v591 = vunpack.c.0.s8 %v590
        %v592 = vperm.slane %v586, %v591
        %v594 = vunpack.c.l.s4 1934713408
        %v595 = vunpack.c.0.s8 %v594
        %v596 = vperm.slane %v588, %v595
        %v597 = vrot.slane %v568, 4
        %v598 = vsel %vm413, %v597, %v556
        %v599 = vrot.slane %v556, 4
        %v600 = vsel %vm413, %v568, %v599
        %v602 = vunpack.c.l.s4 1934713408
        %v603 = vunpack.c.0.s8 %v602
        %v604 = vperm.slane %v598, %v603
        %v606 = vunpack.c.l.s4 1934713408
        %v607 = vunpack.c.0.s8 %v606
        %v608 = vperm.slane %v600, %v607
        %v609 = vrot.slane %v572, 4
        %v610 = vsel %vm413, %v609, %v560
        %v611 = vrot.slane %v560, 4
        %v612 = vsel %vm413, %v572, %v611
        %v614 = vunpack.c.l.s4 1934713408
        %v615 = vunpack.c.0.s8 %v614
        %v616 = vperm.slane %v610, %v615
        %v618 = vunpack.c.l.s4 1934713408
        %v619 = vunpack.c.0.s8 %v618
        %v620 = vperm.slane %v612, %v619
        %v621 = vrot.slane %v604, 4
        %v622 = vsel %vm413, %v621, %v580
        %v623 = vrot.slane %v580, 4
        %v624 = vsel %vm413, %v604, %v623
        %v625 = vrot.slane %v608, 4
        %v626 = vsel %vm413, %v625, %v584
        %v627 = vrot.slane %v584, 4
        %v628 = vsel %vm413, %v608, %v627
        %v629 = vrot.slane %v616, 4
        %v630 = vsel %vm413, %v629, %v592
        %v631 = vrot.slane %v592, 4
        %v632 = vsel %vm413, %v616, %v631
        %v633 = vrot.slane %v620, 4
        %v634 = vsel %vm413, %v633, %v596
        %v635 = vrot.slane %v596, 4
        %v636 = vsel %vm413, %v620, %v635
        %v637 = vrot.slane %v296, 4
        %v638 = vsel %vm413, %v637, %v288
        %v639 = vrot.slane %v288, 4
        %v640 = vsel %vm413, %v296, %v639
        %v642 = vunpack.c.l.s4 1983009808
        %v643 = vunpack.c.0.s8 %v642
        %v644 = vperm.slane %v638, %v643
        %v646 = vunpack.c.l.s4 1983009808
        %v647 = vunpack.c.0.s8 %v646
        %v648 = vperm.slane %v640, %v647
        %v649 = vrot.slane %v300, 4
        %v650 = vsel %vm413, %v649, %v292
        %v651 = vrot.slane %v292, 4
        %v652 = vsel %vm413, %v300, %v651
        %v654 = vunpack.c.l.s4 1983009808
        %v655 = vunpack.c.0.s8 %v654
        %v656 = vperm.slane %v650, %v655
        %v658 = vunpack.c.l.s4 1983009808
        %v659 = vunpack.c.0.s8 %v658
        %v660 = vperm.slane %v652, %v659
        %v661 = vrot.slane %v320, 4
        %v662 = vsel %vm413, %v661, %v312
        %v663 = vrot.slane %v312, 4
        %v664 = vsel %vm413, %v320, %v663
        %v666 = vunpack.c.l.s4 1983009808
        %v667 = vunpack.c.0.s8 %v666
        %v668 = vperm.slane %v662, %v667
        %v670 = vunpack.c.l.s4 1983009808
        %v671 = vunpack.c.0.s8 %v670
        %v672 = vperm.slane %v664, %v671
        %v673 = vrot.slane %v324, 4
        %v674 = vsel %vm413, %v673, %v316
        %v675 = vrot.slane %v316, 4
        %v676 = vsel %vm413, %v324, %v675
        %v678 = vunpack.c.l.s4 1983009808
        %v679 = vunpack.c.0.s8 %v678
        %v680 = vperm.slane %v674, %v679
        %v682 = vunpack.c.l.s4 1983009808
        %v683 = vunpack.c.0.s8 %v682
        %v684 = vperm.slane %v676, %v683
        %v685 = vrot.slane %v656, 4
        %v686 = vsel %vm413, %v685, %v644
        %v687 = vrot.slane %v644, 4
        %v688 = vsel %vm413, %v656, %v687
        %v690 = vunpack.c.l.s4 1934713408
        %v691 = vunpack.c.0.s8 %v690
        %v692 = vperm.slane %v686, %v691
        %v694 = vunpack.c.l.s4 1934713408
        %v695 = vunpack.c.0.s8 %v694
        %v696 = vperm.slane %v688, %v695
        %v697 = vrot.slane %v660, 4
        %v698 = vsel %vm413, %v697, %v648
        %v699 = vrot.slane %v648, 4
        %v700 = vsel %vm413, %v660, %v699
        %v702 = vunpack.c.l.s4 1934713408
        %v703 = vunpack.c.0.s8 %v702
        %v704 = vperm.slane %v698, %v703
        %v706 = vunpack.c.l.s4 1934713408
        %v707 = vunpack.c.0.s8 %v706
        %v708 = vperm.slane %v700, %v707
        %v709 = vrot.slane %v680, 4
        %v710 = vsel %vm413, %v709, %v668
        %v711 = vrot.slane %v668, 4
        %v712 = vsel %vm413, %v680, %v711
        %v714 = vunpack.c.l.s4 1934713408
        %v715 = vunpack.c.0.s8 %v714
        %v716 = vperm.slane %v710, %v715
        %v718 = vunpack.c.l.s4 1934713408
        %v719 = vunpack.c.0.s8 %v718
        %v720 = vperm.slane %v712, %v719
        %v721 = vrot.slane %v684, 4
        %v722 = vsel %vm413, %v721, %v672
        %v723 = vrot.slane %v672, 4
        %v724 = vsel %vm413, %v684, %v723
        %v726 = vunpack.c.l.s4 1934713408
        %v727 = vunpack.c.0.s8 %v726
        %v728 = vperm.slane %v722, %v727
        %v730 = vunpack.c.l.s4 1934713408
        %v731 = vunpack.c.0.s8 %v730
        %v732 = vperm.slane %v724, %v731
        %v733 = vrot.slane %v716, 4
        %v734 = vsel %vm413, %v733, %v692
        %v735 = vrot.slane %v692, 4
        %v736 = vsel %vm413, %v716, %v735
        %v737 = vrot.slane %v720, 4
        %v738 = vsel %vm413, %v737, %v696
        %v739 = vrot.slane %v696, 4
        %v740 = vsel %vm413, %v720, %v739
        %v741 = vrot.slane %v728, 4
        %v742 = vsel %vm413, %v741, %v704
        %v743 = vrot.slane %v704, 4
        %v744 = vsel %vm413, %v728, %v743
        %v745 = vrot.slane %v732, 4
        %v746 = vsel %vm413, %v745, %v708
        %v747 = vrot.slane %v708, 4
        %v748 = vsel %vm413, %v732, %v747
        %v749 = vrot.slane %v348, 4
        %v750 = vsel %vm413, %v749, %v338
        %v751 = vrot.slane %v338, 4
        %v752 = vsel %vm413, %v348, %v751
        %v754 = vunpack.c.l.s4 1983009808
        %v755 = vunpack.c.0.s8 %v754
        %v756 = vperm.slane %v750, %v755
        %v758 = vunpack.c.l.s4 1983009808
        %v759 = vunpack.c.0.s8 %v758
        %v760 = vperm.slane %v752, %v759
        %v761 = vrot.slane %v353, 4
        %v762 = vsel %vm413, %v761, %v343
        %v763 = vrot.slane %v343, 4
        %v764 = vsel %vm413, %v353, %v763
        %v766 = vunpack.c.l.s4 1983009808
        %v767 = vunpack.c.0.s8 %v766
        %v768 = vperm.slane %v762, %v767
        %v770 = vunpack.c.l.s4 1983009808
        %v771 = vunpack.c.0.s8 %v770
        %v772 = vperm.slane %v764, %v771
        %v773 = vrot.slane %v373, 4
        %v774 = vsel %vm413, %v773, %v365
        %v775 = vrot.slane %v365, 4
        %v776 = vsel %vm413, %v373, %v775
        %v778 = vunpack.c.l.s4 1983009808
        %v779 = vunpack.c.0.s8 %v778
        %v780 = vperm.slane %v774, %v779
        %v782 = vunpack.c.l.s4 1983009808
        %v783 = vunpack.c.0.s8 %v782
        %v784 = vperm.slane %v776, %v783
        %v785 = vrot.slane %v377, 4
        %v786 = vsel %vm413, %v785, %v369
        %v787 = vrot.slane %v369, 4
        %v788 = vsel %vm413, %v377, %v787
        %v790 = vunpack.c.l.s4 1983009808
        %v791 = vunpack.c.0.s8 %v790
        %v792 = vperm.slane %v786, %v791
        %v794 = vunpack.c.l.s4 1983009808
        %v795 = vunpack.c.0.s8 %v794
        %v796 = vperm.slane %v788, %v795
        %v797 = vrot.slane %v768, 4
        %v798 = vsel %vm413, %v797, %v756
        %v799 = vrot.slane %v756, 4
        %v800 = vsel %vm413, %v768, %v799
        %v802 = vunpack.c.l.s4 1934713408
        %v803 = vunpack.c.0.s8 %v802
        %v804 = vperm.slane %v798, %v803
        %v806 = vunpack.c.l.s4 1934713408
        %v807 = vunpack.c.0.s8 %v806
        %v808 = vperm.slane %v800, %v807
        %v809 = vrot.slane %v772, 4
        %v810 = vsel %vm413, %v809, %v760
        %v811 = vrot.slane %v760, 4
        %v812 = vsel %vm413, %v772, %v811
        %v814 = vunpack.c.l.s4 1934713408
        %v815 = vunpack.c.0.s8 %v814
        %v816 = vperm.slane %v810, %v815
        %v818 = vunpack.c.l.s4 1934713408
        %v819 = vunpack.c.0.s8 %v818
        %v820 = vperm.slane %v812, %v819
        %v821 = vrot.slane %v792, 4
        %v822 = vsel %vm413, %v821, %v780
        %v823 = vrot.slane %v780, 4
        %v824 = vsel %vm413, %v792, %v823
        %v826 = vunpack.c.l.s4 1934713408
        %v827 = vunpack.c.0.s8 %v826
        %v828 = vperm.slane %v822, %v827
        %v830 = vunpack.c.l.s4 1934713408
        %v831 = vunpack.c.0.s8 %v830
        %v832 = vperm.slane %v824, %v831
        %v833 = vrot.slane %v796, 4
        %v834 = vsel %vm413, %v833, %v784
        %v835 = vrot.slane %v784, 4
        %v836 = vsel %vm413, %v796, %v835
        %v838 = vunpack.c.l.s4 1934713408
        %v839 = vunpack.c.0.s8 %v838
        %v840 = vperm.slane %v834, %v839
        %v842 = vunpack.c.l.s4 1934713408
        %v843 = vunpack.c.0.s8 %v842
        %v844 = vperm.slane %v836, %v843
        %v845 = vrot.slane %v828, 4
        %v846 = vsel %vm413, %v845, %v804
        %v847 = vrot.slane %v804, 4
        %v848 = vsel %vm413, %v828, %v847
        %v849 = vrot.slane %v832, 4
        %v850 = vsel %vm413, %v849, %v808
        %v851 = vrot.slane %v808, 4
        %v852 = vsel %vm413, %v832, %v851
        %v853 = vrot.slane %v840, 4
        %v854 = vsel %vm413, %v853, %v816
        %v855 = vrot.slane %v816, 4
        %v856 = vsel %vm413, %v840, %v855
        %v857 = vrot.slane %v844, 4
        %v858 = vsel %vm413, %v857, %v820
        %v859 = vrot.slane %v820, 4
        %v860 = vsel %vm413, %v844, %v859
        %v861 = vrot.slane %v397, 4
        %v862 = vsel %vm413, %v861, %v389
        %v863 = vrot.slane %v389, 4
        %v864 = vsel %vm413, %v397, %v863
        %v866 = vunpack.c.l.s4 1983009808
        %v867 = vunpack.c.0.s8 %v866
        %v868 = vperm.slane %v862, %v867
        %v870 = vunpack.c.l.s4 1983009808
        %v871 = vunpack.c.0.s8 %v870
        %v872 = vperm.slane %v864, %v871
        %v873 = vrot.slane %v401, 4
        %v874 = vsel %vm413, %v873, %v393
        %v875 = vrot.slane %v393, 4
        %v876 = vsel %vm413, %v401, %v875
        %v878 = vunpack.c.l.s4 1983009808
        %v879 = vunpack.c.0.s8 %v878
        %v880 = vperm.slane %v874, %v879
        %v882 = vunpack.c.l.s4 1983009808
        %v883 = vunpack.c.0.s8 %v882
        %v884 = vperm.slane %v876, %v883
        %v885 = vrot.slane %v880, 4
        %v886 = vsel %vm413, %v885, %v868
        %v887 = vrot.slane %v868, 4
        %v888 = vsel %vm413, %v880, %v887
        %v890 = vunpack.c.l.s4 1934713408
        %v891 = vunpack.c.0.s8 %v890
        %v892 = vperm.slane %v886, %v891
        %v894 = vunpack.c.l.s4 1934713408
        %v895 = vunpack.c.0.s8 %v894
        %v896 = vperm.slane %v888, %v895
        %v897 = vrot.slane %v884, 4
        %v898 = vsel %vm413, %v897, %v872
        %v899 = vrot.slane %v872, 4
        %v900 = vsel %vm413, %v884, %v899
        %v902 = vunpack.c.l.s4 1934713408
        %v903 = vunpack.c.0.s8 %v902
        %v904 = vperm.slane %v898, %v903
        %v906 = vunpack.c.l.s4 1934713408
        %v907 = vunpack.c.0.s8 %v906
        %v908 = vperm.slane %v900, %v907
        %v909 = vrot.slane %v892, 4
        %v910 = vsel %vm413, 0.0, %v909
        %v911 = vrot.slane %v896, 4
        %v912 = vsel %vm413, 0.0, %v911
        %v913 = vrot.slane %v904, 4
        %v914 = vsel %vm413, 0.0, %v913
        %v915 = vrot.slane %v908, 4
        %v916 = vsel %vm413, 0.0, %v915
        %v917 = vrot.slane %v193, 4
        %v918 = vsel %vm413, %v917, %v187
        %v919 = vrot.slane %v187, 4
        %v920 = vsel %vm413, %v193, %v919
        %v922 = vunpack.c.l.s4 1983009808
        %v923 = vunpack.c.0.s8 %v922
        %v924 = vperm.slane %v918, %v923
        %v926 = vunpack.c.l.s4 1983009808
        %v927 = vunpack.c.0.s8 %v926
        %v928 = vperm.slane %v920, %v927
        %v929 = vrot.slane %v196, 4
        %v930 = vsel %vm413, %v929, %v190
        %v931 = vrot.slane %v190, 4
        %v932 = vsel %vm413, %v196, %v931
        %v934 = vunpack.c.l.s4 1983009808
        %v935 = vunpack.c.0.s8 %v934
        %v936 = vperm.slane %v930, %v935
        %v938 = vunpack.c.l.s4 1983009808
        %v939 = vunpack.c.0.s8 %v938
        %v940 = vperm.slane %v932, %v939
        %v941 = vrot.slane %v217, 4
        %v942 = vsel %vm413, %v941, %v209
        %v943 = vrot.slane %v209, 4
        %v944 = vsel %vm413, %v217, %v943
        %v946 = vunpack.c.l.s4 1983009808
        %v947 = vunpack.c.0.s8 %v946
        %v948 = vperm.slane %v942, %v947
        %v950 = vunpack.c.l.s4 1983009808
        %v951 = vunpack.c.0.s8 %v950
        %v952 = vperm.slane %v944, %v951
        %v953 = vrot.slane %v221, 4
        %v954 = vsel %vm413, %v953, %v213
        %v955 = vrot.slane %v213, 4
        %v956 = vsel %vm413, %v221, %v955
        %v958 = vunpack.c.l.s4 1983009808
        %v959 = vunpack.c.0.s8 %v958
        %v960 = vperm.slane %v954, %v959
        %v962 = vunpack.c.l.s4 1983009808
        %v963 = vunpack.c.0.s8 %v962
        %v964 = vperm.slane %v956, %v963
        %v965 = vrot.slane %v936, 4
        %v966 = vsel %vm413, %v965, %v924
        %v967 = vrot.slane %v924, 4
        %v968 = vsel %vm413, %v936, %v967
        %v970 = vunpack.c.l.s4 1934713408
        %v971 = vunpack.c.0.s8 %v970
        %v972 = vperm.slane %v966, %v971
        %v974 = vunpack.c.l.s4 1934713408
        %v975 = vunpack.c.0.s8 %v974
        %v976 = vperm.slane %v968, %v975
        %v977 = vrot.slane %v940, 4
        %v978 = vsel %vm413, %v977, %v928
        %v979 = vrot.slane %v928, 4
        %v980 = vsel %vm413, %v940, %v979
        %v982 = vunpack.c.l.s4 1934713408
        %v983 = vunpack.c.0.s8 %v982
        %v984 = vperm.slane %v978, %v983
        %v986 = vunpack.c.l.s4 1934713408
        %v987 = vunpack.c.0.s8 %v986
        %v988 = vperm.slane %v980, %v987
        %v989 = vrot.slane %v960, 4
        %v990 = vsel %vm413, %v989, %v948
        %v991 = vrot.slane %v948, 4
        %v992 = vsel %vm413, %v960, %v991
        %v994 = vunpack.c.l.s4 1934713408
        %v995 = vunpack.c.0.s8 %v994
        %v996 = vperm.slane %v990, %v995
        %v998 = vunpack.c.l.s4 1934713408
        %v999 = vunpack.c.0.s8 %v998
        %v1000 = vperm.slane %v992, %v999
        %v1001 = vrot.slane %v964, 4
        %v1002 = vsel %vm413, %v1001, %v952
        %v1003 = vrot.slane %v952, 4
        %v1004 = vsel %vm413, %v964, %v1003
        %v1006 = vunpack.c.l.s4 1934713408
        %v1007 = vunpack.c.0.s8 %v1006
        %v1008 = vperm.slane %v1002, %v1007
        %v1010 = vunpack.c.l.s4 1934713408
        %v1011 = vunpack.c.0.s8 %v1010
        %v1012 = vperm.slane %v1004, %v1011
        %v1013 = vrot.slane %v996, 4
        %v1014 = vsel %vm413, %v1013, %v972
        %v1015 = vrot.slane %v972, 4
        %v1016 = vsel %vm413, %v996, %v1015
        %v1017 = vrot.slane %v1000, 4
        %v1018 = vsel %vm413, %v1017, %v976
        %v1019 = vrot.slane %v976, 4
        %v1020 = vsel %vm413, %v1000, %v1019
        %v1021 = vrot.slane %v1008, 4
        %v1022 = vsel %vm413, %v1021, %v984
        %v1023 = vrot.slane %v984, 4
        %v1024 = vsel %vm413, %v1008, %v1023
        %v1025 = vrot.slane %v1012, 4
        %v1026 = vsel %vm413, %v1025, %v988
        %v1027 = vrot.slane %v988, 4
        %v1028 = vsel %vm413, %v1012, %v1027
        %v1029 = vrot.slane %v241, 4
        %v1030 = vsel %vm413, %v1029, %v233
        %v1031 = vrot.slane %v233, 4
        %v1032 = vsel %vm413, %v241, %v1031
        %v1034 = vunpack.c.l.s4 1983009808
        %v1035 = vunpack.c.0.s8 %v1034
        %v1036 = vperm.slane %v1030, %v1035
        %v1038 = vunpack.c.l.s4 1983009808
        %v1039 = vunpack.c.0.s8 %v1038
        %v1040 = vperm.slane %v1032, %v1039
        %v1041 = vrot.slane %v245, 4
        %v1042 = vsel %vm413, %v1041, %v237
        %v1043 = vrot.slane %v237, 4
        %v1044 = vsel %vm413, %v245, %v1043
        %v1046 = vunpack.c.l.s4 1983009808
        %v1047 = vunpack.c.0.s8 %v1046
        %v1048 = vperm.slane %v1042, %v1047
        %v1050 = vunpack.c.l.s4 1983009808
        %v1051 = vunpack.c.0.s8 %v1050
        %v1052 = vperm.slane %v1044, %v1051
        %v1053 = vrot.slane %v273, 4
        %v1054 = vsel %vm413, %v1053, %v263
        %v1055 = vrot.slane %v263, 4
        %v1056 = vsel %vm413, %v273, %v1055
        %v1058 = vunpack.c.l.s4 1983009808
        %v1059 = vunpack.c.0.s8 %v1058
        %v1060 = vperm.slane %v1054, %v1059
        %v1062 = vunpack.c.l.s4 1983009808
        %v1063 = vunpack.c.0.s8 %v1062
        %v1064 = vperm.slane %v1056, %v1063
        %v1065 = vrot.slane %v278, 4
        %v1066 = vsel %vm413, %v1065, %v268
        %v1067 = vrot.slane %v268, 4
        %v1068 = vsel %vm413, %v278, %v1067
        %v1070 = vunpack.c.l.s4 1983009808
        %v1071 = vunpack.c.0.s8 %v1070
        %v1072 = vperm.slane %v1066, %v1071
        %v1074 = vunpack.c.l.s4 1983009808
        %v1075 = vunpack.c.0.s8 %v1074
        %v1076 = vperm.slane %v1068, %v1075
        %v1077 = vrot.slane %v1048, 4
        %v1078 = vsel %vm413, %v1077, %v1036
        %v1079 = vrot.slane %v1036, 4
        %v1080 = vsel %vm413, %v1048, %v1079
        %v1082 = vunpack.c.l.s4 1934713408
        %v1083 = vunpack.c.0.s8 %v1082
        %v1084 = vperm.slane %v1078, %v1083
        %v1086 = vunpack.c.l.s4 1934713408
        %v1087 = vunpack.c.0.s8 %v1086
        %v1088 = vperm.slane %v1080, %v1087
        %v1089 = vrot.slane %v1052, 4
        %v1090 = vsel %vm413, %v1089, %v1040
        %v1091 = vrot.slane %v1040, 4
        %v1092 = vsel %vm413, %v1052, %v1091
        %v1094 = vunpack.c.l.s4 1934713408
        %v1095 = vunpack.c.0.s8 %v1094
        %v1096 = vperm.slane %v1090, %v1095
        %v1098 = vunpack.c.l.s4 1934713408
        %v1099 = vunpack.c.0.s8 %v1098
        %v1100 = vperm.slane %v1092, %v1099
        %v1101 = vrot.slane %v1072, 4
        %v1102 = vsel %vm413, %v1101, %v1060
        %v1103 = vrot.slane %v1060, 4
        %v1104 = vsel %vm413, %v1072, %v1103
        %v1106 = vunpack.c.l.s4 1934713408
        %v1107 = vunpack.c.0.s8 %v1106
        %v1108 = vperm.slane %v1102, %v1107
        %v1110 = vunpack.c.l.s4 1934713408
        %v1111 = vunpack.c.0.s8 %v1110
        %v1112 = vperm.slane %v1104, %v1111
        %v1113 = vrot.slane %v1076, 4
        %v1114 = vsel %vm413, %v1113, %v1064
        %v1115 = vrot.slane %v1064, 4
        %v1116 = vsel %vm413, %v1076, %v1115
        %v1118 = vunpack.c.l.s4 1934713408
        %v1119 = vunpack.c.0.s8 %v1118
        %v1120 = vperm.slane %v1114, %v1119
        %v1122 = vunpack.c.l.s4 1934713408
        %v1123 = vunpack.c.0.s8 %v1122
        %v1124 = vperm.slane %v1116, %v1123
        %v1125 = vrot.slane %v1108, 4
        %v1126 = vsel %vm413, %v1125, %v1084
        %v1127 = vrot.slane %v1084, 4
        %v1128 = vsel %vm413, %v1108, %v1127
        %v1129 = vrot.slane %v1112, 4
        %v1130 = vsel %vm413, %v1129, %v1088
        %v1131 = vrot.slane %v1088, 4
        %v1132 = vsel %vm413, %v1112, %v1131
        %v1133 = vrot.slane %v1120, 4
        %v1134 = vsel %vm413, %v1133, %v1096
        %v1135 = vrot.slane %v1096, 4
        %v1136 = vsel %vm413, %v1120, %v1135
        %v1137 = vrot.slane %v1124, 4
        %v1138 = vsel %vm413, %v1137, %v1100
        %v1139 = vrot.slane %v1100, 4
        %v1140 = vsel %vm413, %v1124, %v1139
        %v1141 = vrot.slane %v298, 4
        %v1142 = vsel %vm413, %v1141, %v290
        %v1143 = vrot.slane %v290, 4
        %v1144 = vsel %vm413, %v298, %v1143
        %v1146 = vunpack.c.l.s4 1983009808
        %v1147 = vunpack.c.0.s8 %v1146
        %v1148 = vperm.slane %v1142, %v1147
        %v1150 = vunpack.c.l.s4 1983009808
        %v1151 = vunpack.c.0.s8 %v1150
        %v1152 = vperm.slane %v1144, %v1151
        %v1153 = vrot.slane %v302, 4
        %v1154 = vsel %vm413, %v1153, %v294
        %v1155 = vrot.slane %v294, 4
        %v1156 = vsel %vm413, %v302, %v1155
        %v1158 = vunpack.c.l.s4 1983009808
        %v1159 = vunpack.c.0.s8 %v1158
        %v1160 = vperm.slane %v1154, %v1159
        %v1162 = vunpack.c.l.s4 1983009808
        %v1163 = vunpack.c.0.s8 %v1162
        %v1164 = vperm.slane %v1156, %v1163
        %v1165 = vrot.slane %v322, 4
        %v1166 = vsel %vm413, %v1165, %v314
        %v1167 = vrot.slane %v314, 4
        %v1168 = vsel %vm413, %v322, %v1167
        %v1170 = vunpack.c.l.s4 1983009808
        %v1171 = vunpack.c.0.s8 %v1170
        %v1172 = vperm.slane %v1166, %v1171
        %v1174 = vunpack.c.l.s4 1983009808
        %v1175 = vunpack.c.0.s8 %v1174
        %v1176 = vperm.slane %v1168, %v1175
        %v1177 = vrot.slane %v326, 4
        %v1178 = vsel %vm413, %v1177, %v318
        %v1179 = vrot.slane %v318, 4
        %v1180 = vsel %vm413, %v326, %v1179
        %v1182 = vunpack.c.l.s4 1983009808
        %v1183 = vunpack.c.0.s8 %v1182
        %v1184 = vperm.slane %v1178, %v1183
        %v1186 = vunpack.c.l.s4 1983009808
        %v1187 = vunpack.c.0.s8 %v1186
        %v1188 = vperm.slane %v1180, %v1187
        %v1189 = vrot.slane %v1160, 4
        %v1190 = vsel %vm413, %v1189, %v1148
        %v1191 = vrot.slane %v1148, 4
        %v1192 = vsel %vm413, %v1160, %v1191
        %v1194 = vunpack.c.l.s4 1934713408
        %v1195 = vunpack.c.0.s8 %v1194
        %v1196 = vperm.slane %v1190, %v1195
        %v1198 = vunpack.c.l.s4 1934713408
        %v1199 = vunpack.c.0.s8 %v1198
        %v1200 = vperm.slane %v1192, %v1199
        %v1201 = vrot.slane %v1164, 4
        %v1202 = vsel %vm413, %v1201, %v1152
        %v1203 = vrot.slane %v1152, 4
        %v1204 = vsel %vm413, %v1164, %v1203
        %v1206 = vunpack.c.l.s4 1934713408
        %v1207 = vunpack.c.0.s8 %v1206
        %v1208 = vperm.slane %v1202, %v1207
        %v1210 = vunpack.c.l.s4 1934713408
        %v1211 = vunpack.c.0.s8 %v1210
        %v1212 = vperm.slane %v1204, %v1211
        %v1213 = vrot.slane %v1184, 4
        %v1214 = vsel %vm413, %v1213, %v1172
        %v1215 = vrot.slane %v1172, 4
        %v1216 = vsel %vm413, %v1184, %v1215
        %v1218 = vunpack.c.l.s4 1934713408
        %v1219 = vunpack.c.0.s8 %v1218
        %v1220 = vperm.slane %v1214, %v1219
        %v1222 = vunpack.c.l.s4 1934713408
        %v1223 = vunpack.c.0.s8 %v1222
        %v1224 = vperm.slane %v1216, %v1223
        %v1225 = vrot.slane %v1188, 4
        %v1226 = vsel %vm413, %v1225, %v1176
        %v1227 = vrot.slane %v1176, 4
        %v1228 = vsel %vm413, %v1188, %v1227
        %v1230 = vunpack.c.l.s4 1934713408
        %v1231 = vunpack.c.0.s8 %v1230
        %v1232 = vperm.slane %v1226, %v1231
        %v1234 = vunpack.c.l.s4 1934713408
        %v1235 = vunpack.c.0.s8 %v1234
        %v1236 = vperm.slane %v1228, %v1235
        %v1237 = vrot.slane %v1220, 4
        %v1238 = vsel %vm413, %v1237, %v1196
        %v1239 = vrot.slane %v1196, 4
        %v1240 = vsel %vm413, %v1220, %v1239
        %v1241 = vrot.slane %v1224, 4
        %v1242 = vsel %vm413, %v1241, %v1200
        %v1243 = vrot.slane %v1200, 4
        %v1244 = vsel %vm413, %v1224, %v1243
        %v1245 = vrot.slane %v1232, 4
        %v1246 = vsel %vm413, %v1245, %v1208
        %v1247 = vrot.slane %v1208, 4
        %v1248 = vsel %vm413, %v1232, %v1247
        %v1249 = vrot.slane %v1236, 4
        %v1250 = vsel %vm413, %v1249, %v1212
        %v1251 = vrot.slane %v1212, 4
        %v1252 = vsel %vm413, %v1236, %v1251
        %v1253 = vrot.slane %v350, 4
        %v1254 = vsel %vm413, %v1253, %v340
        %v1255 = vrot.slane %v340, 4
        %v1256 = vsel %vm413, %v350, %v1255
        %v1258 = vunpack.c.l.s4 1983009808
        %v1259 = vunpack.c.0.s8 %v1258
        %v1260 = vperm.slane %v1254, %v1259
        %v1262 = vunpack.c.l.s4 1983009808
        %v1263 = vunpack.c.0.s8 %v1262
        %v1264 = vperm.slane %v1256, %v1263
        %v1265 = vrot.slane %v355, 4
        %v1266 = vsel %vm413, %v1265, %v345
        %v1267 = vrot.slane %v345, 4
        %v1268 = vsel %vm413, %v355, %v1267
        %v1270 = vunpack.c.l.s4 1983009808
        %v1271 = vunpack.c.0.s8 %v1270
        %v1272 = vperm.slane %v1266, %v1271
        %v1274 = vunpack.c.l.s4 1983009808
        %v1275 = vunpack.c.0.s8 %v1274
        %v1276 = vperm.slane %v1268, %v1275
        %v1277 = vrot.slane %v375, 4
        %v1278 = vsel %vm413, %v1277, %v367
        %v1279 = vrot.slane %v367, 4
        %v1280 = vsel %vm413, %v375, %v1279
        %v1282 = vunpack.c.l.s4 1983009808
        %v1283 = vunpack.c.0.s8 %v1282
        %v1284 = vperm.slane %v1278, %v1283
        %v1286 = vunpack.c.l.s4 1983009808
        %v1287 = vunpack.c.0.s8 %v1286
        %v1288 = vperm.slane %v1280, %v1287
        %v1289 = vrot.slane %v379, 4
        %v1290 = vsel %vm413, %v1289, %v371
        %v1291 = vrot.slane %v371, 4
        %v1292 = vsel %vm413, %v379, %v1291
        %v1294 = vunpack.c.l.s4 1983009808
        %v1295 = vunpack.c.0.s8 %v1294
        %v1296 = vperm.slane %v1290, %v1295
        %v1298 = vunpack.c.l.s4 1983009808
        %v1299 = vunpack.c.0.s8 %v1298
        %v1300 = vperm.slane %v1292, %v1299
        %v1301 = vrot.slane %v1272, 4
        %v1302 = vsel %vm413, %v1301, %v1260
        %v1303 = vrot.slane %v1260, 4
        %v1304 = vsel %vm413, %v1272, %v1303
        %v1306 = vunpack.c.l.s4 1934713408
        %v1307 = vunpack.c.0.s8 %v1306
        %v1308 = vperm.slane %v1302, %v1307
        %v1310 = vunpack.c.l.s4 1934713408
        %v1311 = vunpack.c.0.s8 %v1310
        %v1312 = vperm.slane %v1304, %v1311
        %v1313 = vrot.slane %v1276, 4
        %v1314 = vsel %vm413, %v1313, %v1264
        %v1315 = vrot.slane %v1264, 4
        %v1316 = vsel %vm413, %v1276, %v1315
        %v1318 = vunpack.c.l.s4 1934713408
        %v1319 = vunpack.c.0.s8 %v1318
        %v1320 = vperm.slane %v1314, %v1319
        %v1322 = vunpack.c.l.s4 1934713408
        %v1323 = vunpack.c.0.s8 %v1322
        %v1324 = vperm.slane %v1316, %v1323
        %v1325 = vrot.slane %v1296, 4
        %v1326 = vsel %vm413, %v1325, %v1284
        %v1327 = vrot.slane %v1284, 4
        %v1328 = vsel %vm413, %v1296, %v1327
        %v1330 = vunpack.c.l.s4 1934713408
        %v1331 = vunpack.c.0.s8 %v1330
        %v1332 = vperm.slane %v1326, %v1331
        %v1334 = vunpack.c.l.s4 1934713408
        %v1335 = vunpack.c.0.s8 %v1334
        %v1336 = vperm.slane %v1328, %v1335
        %v1337 = vrot.slane %v1300, 4
        %v1338 = vsel %vm413, %v1337, %v1288
        %v1339 = vrot.slane %v1288, 4
        %v1340 = vsel %vm413, %v1300, %v1339
        %v1342 = vunpack.c.l.s4 1934713408
        %v1343 = vunpack.c.0.s8 %v1342
        %v1344 = vperm.slane %v1338, %v1343
        %v1346 = vunpack.c.l.s4 1934713408
        %v1347 = vunpack.c.0.s8 %v1346
        %v1348 = vperm.slane %v1340, %v1347
        %v1349 = vrot.slane %v1332, 4
        %v1350 = vsel %vm413, %v1349, %v1308
        %v1351 = vrot.slane %v1308, 4
        %v1352 = vsel %vm413, %v1332, %v1351
        %v1353 = vrot.slane %v1336, 4
        %v1354 = vsel %vm413, %v1353, %v1312
        %v1355 = vrot.slane %v1312, 4
        %v1356 = vsel %vm413, %v1336, %v1355
        %v1357 = vrot.slane %v1344, 4
        %v1358 = vsel %vm413, %v1357, %v1320
        %v1359 = vrot.slane %v1320, 4
        %v1360 = vsel %vm413, %v1344, %v1359
        %v1361 = vrot.slane %v1348, 4
        %v1362 = vsel %vm413, %v1361, %v1324
        %v1363 = vrot.slane %v1324, 4
        %v1364 = vsel %vm413, %v1348, %v1363
        %v1365 = vrot.slane %v399, 4
        %v1366 = vsel %vm413, %v1365, %v391
        %v1367 = vrot.slane %v391, 4
        %v1368 = vsel %vm413, %v399, %v1367
        %v1370 = vunpack.c.l.s4 1983009808
        %v1371 = vunpack.c.0.s8 %v1370
        %v1372 = vperm.slane %v1366, %v1371
        %v1374 = vunpack.c.l.s4 1983009808
        %v1375 = vunpack.c.0.s8 %v1374
        %v1376 = vperm.slane %v1368, %v1375
        %v1377 = vrot.slane %v403, 4
        %v1378 = vsel %vm413, %v1377, %v395
        %v1379 = vrot.slane %v395, 4
        %v1380 = vsel %vm413, %v403, %v1379
        %v1382 = vunpack.c.l.s4 1983009808
        %v1383 = vunpack.c.0.s8 %v1382
        %v1384 = vperm.slane %v1378, %v1383
        %v1386 = vunpack.c.l.s4 1983009808
        %v1387 = vunpack.c.0.s8 %v1386
        %v1388 = vperm.slane %v1380, %v1387
        %v1389 = vrot.slane %v1384, 4
        %v1390 = vsel %vm413, %v1389, %v1372
        %v1391 = vrot.slane %v1372, 4
        %v1392 = vsel %vm413, %v1384, %v1391
        %v1394 = vunpack.c.l.s4 1934713408
        %v1395 = vunpack.c.0.s8 %v1394
        %v1396 = vperm.slane %v1390, %v1395
        %v1398 = vunpack.c.l.s4 1934713408
        %v1399 = vunpack.c.0.s8 %v1398
        %v1400 = vperm.slane %v1392, %v1399
        %v1401 = vrot.slane %v1388, 4
        %v1402 = vsel %vm413, %v1401, %v1376
        %v1403 = vrot.slane %v1376, 4
        %v1404 = vsel %vm413, %v1388, %v1403
        %v1406 = vunpack.c.l.s4 1934713408
        %v1407 = vunpack.c.0.s8 %v1406
        %v1408 = vperm.slane %v1402, %v1407
        %v1410 = vunpack.c.l.s4 1934713408
        %v1411 = vunpack.c.0.s8 %v1410
        %v1412 = vperm.slane %v1404, %v1411
        %v1413 = vrot.slane %v1396, 4
        %v1414 = vsel %vm413, 0.0, %v1413
        %v1415 = vrot.slane %v1400, 4
        %v1416 = vsel %vm413, 0.0, %v1415
        %v1417 = vrot.slane %v1408, 4
        %v1418 = vsel %vm413, 0.0, %v1417
        %v1419 = vrot.slane %v1412, 4
        %v1420 = vsel %vm413, 0.0, %v1419
        %1426 = vrot.lane.b32.xlu0 %v512, 16
        %v1427 = vpop.permute.xlu0 %1426
        %1428 = vrot.lane.b32.xlu0 %v624, 16
        %v1429 = vpop.permute.xlu0 %1428
        %1430 = vrot.lane.b32.xlu0 %v736, 16
        %v1431 = vpop.permute.xlu0 %1430
        %1432 = vrot.lane.b32.xlu0 %v848, 16
        %v1433 = vpop.permute.xlu0 %1432
        %1434 = vrot.lane.b32.xlu0 %v910, 16
        %v1435 = vpop.permute.xlu0 %1434
        %1446 = vrot.lane.b32.xlu0 %v514, 32
        %v1447 = vpop.permute.xlu0 %1446
        %1448 = vrot.lane.b32.xlu0 %v626, 32
        %v1449 = vpop.permute.xlu0 %1448
        %1450 = vrot.lane.b32.xlu0 %v738, 32
        %v1451 = vpop.permute.xlu0 %1450
        %1452 = vrot.lane.b32.xlu0 %v850, 32
        %v1453 = vpop.permute.xlu0 %1452
        %1454 = vrot.lane.b32.xlu0 %v896, 32
        %v1455 = vpop.permute.xlu0 %1454
        %1466 = vrot.lane.b32.xlu0 %v516, 48
        %v1467 = vpop.permute.xlu0 %1466
        %1468 = vrot.lane.b32.xlu0 %v628, 48
        %v1469 = vpop.permute.xlu0 %1468
        %1470 = vrot.lane.b32.xlu0 %v740, 48
        %v1471 = vpop.permute.xlu0 %1470
        %1472 = vrot.lane.b32.xlu0 %v852, 48
        %v1473 = vpop.permute.xlu0 %1472
        %1474 = vrot.lane.b32.xlu0 %v912, 48
        %v1475 = vpop.permute.xlu0 %1474
        %1486 = vrot.lane.b32.xlu0 %v518, 64
        %v1487 = vpop.permute.xlu0 %1486
        %1488 = vrot.lane.b32.xlu0 %v630, 64
        %v1489 = vpop.permute.xlu0 %1488
        %1490 = vrot.lane.b32.xlu0 %v742, 64
        %v1491 = vpop.permute.xlu0 %1490
        %1492 = vrot.lane.b32.xlu0 %v854, 64
        %v1493 = vpop.permute.xlu0 %1492
        %1494 = vrot.lane.b32.xlu0 %v904, 64
        %v1495 = vpop.permute.xlu0 %1494
        %1506 = vrot.lane.b32.xlu0 %v520, 80
        %v1507 = vpop.permute.xlu0 %1506
        %1508 = vrot.lane.b32.xlu0 %v632, 80
        %v1509 = vpop.permute.xlu0 %1508
        %1510 = vrot.lane.b32.xlu0 %v744, 80
        %v1511 = vpop.permute.xlu0 %1510
        %1512 = vrot.lane.b32.xlu0 %v856, 80
        %v1513 = vpop.permute.xlu0 %1512
        %1514 = vrot.lane.b32.xlu0 %v914, 80
        %v1515 = vpop.permute.xlu0 %1514
        %1526 = vrot.lane.b32.xlu0 %v522, 96
        %v1527 = vpop.permute.xlu0 %1526
        %1528 = vrot.lane.b32.xlu0 %v634, 96
        %v1529 = vpop.permute.xlu0 %1528
        %1530 = vrot.lane.b32.xlu0 %v746, 96
        %v1531 = vpop.permute.xlu0 %1530
        %1532 = vrot.lane.b32.xlu0 %v858, 96
        %v1533 = vpop.permute.xlu0 %1532
        %1534 = vrot.lane.b32.xlu0 %v908, 96
        %v1535 = vpop.permute.xlu0 %1534
        %1546 = vrot.lane.b32.xlu0 %v524, 112
        %v1547 = vpop.permute.xlu0 %1546
        %1548 = vrot.lane.b32.xlu0 %v636, 112
        %v1549 = vpop.permute.xlu0 %1548
        %1550 = vrot.lane.b32.xlu0 %v748, 112
        %v1551 = vpop.permute.xlu0 %1550
        %1552 = vrot.lane.b32.xlu0 %v860, 112
        %v1553 = vpop.permute.xlu0 %1552
        %1554 = vrot.lane.b32.xlu0 %v916, 112
        %v1555 = vpop.permute.xlu0 %1554
        %1566 = vrot.lane.b32.xlu0 %v1016, 16
        %v1567 = vpop.permute.xlu0 %1566
        %1568 = vrot.lane.b32.xlu0 %v1128, 16
        %v1569 = vpop.permute.xlu0 %1568
        %1570 = vrot.lane.b32.xlu0 %v1240, 16
        %v1571 = vpop.permute.xlu0 %1570
        %1572 = vrot.lane.b32.xlu0 %v1352, 16
        %v1573 = vpop.permute.xlu0 %1572
        %1574 = vrot.lane.b32.xlu0 %v1414, 16
        %v1575 = vpop.permute.xlu0 %1574
        %1586 = vrot.lane.b32.xlu0 %v1018, 32
        %v1587 = vpop.permute.xlu0 %1586
        %1588 = vrot.lane.b32.xlu0 %v1130, 32
        %v1589 = vpop.permute.xlu0 %1588
        %1590 = vrot.lane.b32.xlu0 %v1242, 32
        %v1591 = vpop.permute.xlu0 %1590
        %1592 = vrot.lane.b32.xlu0 %v1354, 32
        %v1593 = vpop.permute.xlu0 %1592
        %1594 = vrot.lane.b32.xlu0 %v1400, 32
        %v1595 = vpop.permute.xlu0 %1594
        %1606 = vrot.lane.b32.xlu0 %v1020, 48
        %v1607 = vpop.permute.xlu0 %1606
        %1608 = vrot.lane.b32.xlu0 %v1132, 48
        %v1609 = vpop.permute.xlu0 %1608
        %1610 = vrot.lane.b32.xlu0 %v1244, 48
        %v1611 = vpop.permute.xlu0 %1610
        %1612 = vrot.lane.b32.xlu0 %v1356, 48
        %v1613 = vpop.permute.xlu0 %1612
        %1614 = vrot.lane.b32.xlu0 %v1416, 48
        %v1615 = vpop.permute.xlu0 %1614
        %1626 = vrot.lane.b32.xlu0 %v1022, 64
        %v1627 = vpop.permute.xlu0 %1626
        %1628 = vrot.lane.b32.xlu0 %v1134, 64
        %v1629 = vpop.permute.xlu0 %1628
        %1630 = vrot.lane.b32.xlu0 %v1246, 64
        %v1631 = vpop.permute.xlu0 %1630
        %1632 = vrot.lane.b32.xlu0 %v1358, 64
        %v1633 = vpop.permute.xlu0 %1632
        %1634 = vrot.lane.b32.xlu0 %v1408, 64
        %v1635 = vpop.permute.xlu0 %1634
        %1646 = vrot.lane.b32.xlu0 %v1024, 80
        %v1647 = vpop.permute.xlu0 %1646
        %1648 = vrot.lane.b32.xlu0 %v1136, 80
        %v1649 = vpop.permute.xlu0 %1648
        %1650 = vrot.lane.b32.xlu0 %v1248, 80
        %v1651 = vpop.permute.xlu0 %1650
        %1652 = vrot.lane.b32.xlu0 %v1360, 80
        %v1653 = vpop.permute.xlu0 %1652
        %1654 = vrot.lane.b32.xlu0 %v1418, 80
        %v1655 = vpop.permute.xlu0 %1654
        %1666 = vrot.lane.b32.xlu0 %v1026, 96
        %v1667 = vpop.permute.xlu0 %1666
        %1668 = vrot.lane.b32.xlu0 %v1138, 96
        %v1669 = vpop.permute.xlu0 %1668
        %1670 = vrot.lane.b32.xlu0 %v1250, 96
        %v1671 = vpop.permute.xlu0 %1670
        %1672 = vrot.lane.b32.xlu0 %v1362, 96
        %v1673 = vpop.permute.xlu0 %1672
        %1674 = vrot.lane.b32.xlu0 %v1412, 96
        %v1675 = vpop.permute.xlu0 %1674
        %1686 = vrot.lane.b32.xlu0 %v1028, 112
        %v1687 = vpop.permute.xlu0 %1686
        %1688 = vrot.lane.b32.xlu0 %v1140, 112
        %v1689 = vpop.permute.xlu0 %1688
        %1690 = vrot.lane.b32.xlu0 %v1252, 112
        %v1691 = vpop.permute.xlu0 %1690
        %1692 = vrot.lane.b32.xlu0 %v1364, 112
        %v1693 = vpop.permute.xlu0 %1692
        %1694 = vrot.lane.b32.xlu0 %v1420, 112
        %v1695 = vpop.permute.xlu0 %1694
        %vm1701 = vcmask 130048
        %v1702 = vsel %vm1701, %v510, %v1427
        %v1703 = vsel %vm1701, %v622, %v1429
        %v1704 = vsel %vm1701, %v734, %v1431
        %v1705 = vsel %vm1701, %v846, %v1433
        %v1706 = vsel %vm1701, %v892, %v1435
        %vm1707 = vcmask 261120
        %v1708 = vsel %vm1707, %v1702, %v1447
        %v1709 = vsel %vm1707, %v1703, %v1449
        %v1710 = vsel %vm1707, %v1704, %v1451
        %v1711 = vsel %vm1707, %v1705, %v1453
        %v1712 = vsel %vm1707, %v1706, %v1455
        %vm1713 = vcmask 392192
        %v1714 = vsel %vm1713, %v1708, %v1467
        %v1715 = vsel %vm1713, %v1709, %v1469
        %v1716 = vsel %vm1713, %v1710, %v1471
        %v1717 = vsel %vm1713, %v1711, %v1473
        %v1718 = vsel %vm1713, %v1712, %v1475
        %vm1719 = vcmask 523264
        %v1720 = vsel %vm1719, %v1714, %v1487
        %v1721 = vsel %vm1719, %v1715, %v1489
        %v1722 = vsel %vm1719, %v1716, %v1491
        %v1723 = vsel %vm1719, %v1717, %v1493
        %v1724 = vsel %vm1719, %v1718, %v1495
        %vm1725 = vcmask 654336
        %v1726 = vsel %vm1725, %v1720, %v1507
        %v1727 = vsel %vm1725, %v1721, %v1509
        %v1728 = vsel %vm1725, %v1722, %v1511
        %v1729 = vsel %vm1725, %v1723, %v1513
        %v1730 = vsel %vm1725, %v1724, %v1515
        %vm1731 = vcmask 785408
        %v1732 = vsel %vm1731, %v1726, %v1527
        %v1733 = vsel %vm1731, %v1727, %v1529
        %v1734 = vsel %vm1731, %v1728, %v1531
        %v1735 = vsel %vm1731, %v1729, %v1533
        %v1736 = vsel %vm1731, %v1730, %v1535
        %vm1737 = vcmask 916480
        %v1738 = vsel %vm1737, %v1732, %v1547
        %v1739 = vsel %vm1737, %v1733, %v1549
        %v1740 = vsel %vm1737, %v1734, %v1551
        %v1741 = vsel %vm1737, %v1735, %v1553
        %v1742 = vsel %vm1737, %v1736, %v1555
        %v1743 = vsel %vm1701, %v1014, %v1567
        %v1744 = vsel %vm1701, %v1126, %v1569
        %v1745 = vsel %vm1701, %v1238, %v1571
        %v1746 = vsel %vm1701, %v1350, %v1573
        %v1747 = vsel %vm1701, %v1396, %v1575
        %v1748 = vsel %vm1707, %v1743, %v1587
        %v1749 = vsel %vm1707, %v1744, %v1589
        %v1750 = vsel %vm1707, %v1745, %v1591
        %v1751 = vsel %vm1707, %v1746, %v1593
        %v1752 = vsel %vm1707, %v1747, %v1595
        %v1753 = vsel %vm1713, %v1748, %v1607
        %v1754 = vsel %vm1713, %v1749, %v1609
        %v1755 = vsel %vm1713, %v1750, %v1611
        %v1756 = vsel %vm1713, %v1751, %v1613
        %v1757 = vsel %vm1713, %v1752, %v1615
        %v1758 = vsel %vm1719, %v1753, %v1627
        %v1759 = vsel %vm1719, %v1754, %v1629
        %v1760 = vsel %vm1719, %v1755, %v1631
        %v1761 = vsel %vm1719, %v1756, %v1633
        %v1762 = vsel %vm1719, %v1757, %v1635
        %v1763 = vsel %vm1725, %v1758, %v1647
        %v1764 = vsel %vm1725, %v1759, %v1649
        %v1765 = vsel %vm1725, %v1760, %v1651
        %v1766 = vsel %vm1725, %v1761, %v1653
        %v1767 = vsel %vm1725, %v1762, %v1655
        %v1768 = vsel %vm1731, %v1763, %v1667
        %v1769 = vsel %vm1731, %v1764, %v1669
        %v1770 = vsel %vm1731, %v1765, %v1671
        %v1771 = vsel %vm1731, %v1766, %v1673
        %v1772 = vsel %vm1731, %v1767, %v1675
        %v1773 = vsel %vm1737, %v1768, %v1687
        %v1774 = vsel %vm1737, %v1769, %v1689
        %v1775 = vsel %vm1737, %v1770, %v1691
        %v1776 = vsel %vm1737, %v1771, %v1693
        %v1777 = vsel %vm1737, %v1772, %v1695
        %v1778 = vld [vmem:[%s1] sm:$0xff]
        %v1779 = vld [vmem:[%s2] sm:$0xff]
        %1781 = vset.pattern.permute.xlu0 0
        %1782 = vperm.xlu0 %1781, %v1779
        %v1783 = vpop.permute.xlu0 %1782
        %vm1785 = vcmask 293888
        %v1787 = vsel %vm1785, %v1778, 0
        %vm1789 = vcmask 1043456
        %v1791 = vsel %vm1789, %v1742, 0
        %v1794 = vsel %vm1789, %v1777, 0
        %1796 = vmatpush.msra.mxu0 0.0
        %1797 = vmatpush.msra.mxu0 0.0
        %1798 = vmatpush.msra.mxu0 0.0
        %1799 = vmatpush.msra.mxu0 0.0
        %1800 = vmatpush.msra.mxu0 0.0
        %1801 = vmatpush.msra.mxu0 0.0
        %1802 = vmatpush.msra.mxu0 0.0
        %1803 = vmatpush.msra.mxu0 0.0
        %1804 = vmatpush.msra.mxu0 0.0
        %1805 = vmatpush.msra.mxu0 0.0
        %1806 = vmatpush.msra.mxu0 0.0
        %1807 = vmatpush.msra.mxu0 %v1791
        %1808 = vmatpush.msra.mxu0 %v1741
        %1809 = vmatpush.msra.mxu0 %v1740
        %1810 = vmatpush.msra.mxu0 %v1739
        %1811 = vmatpush.msra.mxu0 %v1738
        %1812 = vmatmul.f32.gmra.mxu0 %v1787
        %v1813 = vpop.f32.mrf.mxu0
        %v1814 = vadd.f32 %v1783, %v1813
        %1815 = vdwg.mxu0
        %1816 = vmatpush.msra.mxu0 0.0
        %1817 = vmatpush.msra.mxu0 0.0
        %1818 = vmatpush.msra.mxu0 0.0
        %1819 = vmatpush.msra.mxu0 0.0
        %1820 = vmatpush.msra.mxu0 0.0
        %1821 = vmatpush.msra.mxu0 0.0
        %1822 = vmatpush.msra.mxu0 0.0
        %1823 = vmatpush.msra.mxu0 0.0
        %1824 = vmatpush.msra.mxu0 0.0
        %1825 = vmatpush.msra.mxu0 0.0
        %1826 = vmatpush.msra.mxu0 0.0
        %1827 = vmatpush.msra.mxu0 %v1794
        %1828 = vmatpush.msra.mxu0 %v1776
        %1829 = vmatpush.msra.mxu0 %v1775
        %1830 = vmatpush.msra.mxu0 %v1774
        %1831 = vmatpush.msra.mxu0 %v1773
        %1832 = vmatmul.f32.gmra.mxu0 %v1787
        %v1833 = vpop.f32.mrf.mxu0
        %v1834 = vadd.f32 %v1783, %v1833
        %1835 = vdwg.mxu0
        %v1836 = vmax.f32 %v1814, 0.0
        %v1837 = vmax.f32 %v1834, 0.0
        %1838 = vst [vmem:[%s177] sm:$0xff] %v1836
        %1839 = vst [vmem:[%s177 + $0x8] sm:$0xff] %v1837
        %s1840 = sand.u32 %s107, 1
        %s1841 = scalar_lea.sflag [#allocation3], %s1840
        %s1842 = sand.u32 %s107, 1
        %s1843 = smul.addr %s1842, 16
        %s1844 = scalar_lea.vmem [#allocation2], %s1843
        // Predicated region
        $region33: #{tpu_custom_call.1} parent=31 // pred_check
          %p1845 = pneg %p117
        $region34: #{tpu_custom_call.1} parent=31 // pred_check_branch
          %1847 = sbr.rel (%p1845) target = $region36
        $region35: #{tpu_custom_call.1} parent=31 // pred_region
          %s1848 = smul.u32 2, %s22
          %1850 = vsyncadd %s1841, 0
          %s1851 = smul.addr %s21, 2
          %s1852 = sadd.s32 %s1848, %s1851
          %s1853 = smul.addr %s1852, 8
          %s1854 = scalar_lea.hbm %s3, %s1853
          %s1856 = sshll.u32 %s1844, 4
          %s1857 = int_to_ptr.vmem [resolvable:$true] %s1856
          %s1858 = sshll.u32 %s1854, 4
          %s1859 = int_to_ptr.hbm [resolvable:$true] %s1858
          %1861 = dma.vmem_to_hbm [thread:$0]  %s1857, 256, %s1859, %s1841
        $region36: #{tpu_custom_call.1} parent=31 // pred_fallthru
          _
      $region32: #{tpu_custom_call.1} parent=5 // pred_fallthru
        _
      %p1862 = scmp.le.s32.totalorder 2, %s12
      // Predicated region
      $region37: #{tpu_custom_call.1} parent=5 // pred_check
        %p1863 = pneg %p1862
      $region38: #{tpu_custom_call.1} parent=5 // pred_check_branch
        %1865 = sbr.rel (%p1863) target = $region40
      $region39: #{tpu_custom_call.1} parent=5 // pred_region
        %s1866 = ssub.s32 %s12, 2
        // Predicated region
        $region41: #{tpu_custom_call.1} parent=39 // pred_check
          %p1867 = pneg %p123
        $region42: #{tpu_custom_call.1} parent=39 // pred_check_branch
          %1869 = sbr.rel (%p1867) target = $region44
        $region43: #{tpu_custom_call.1} parent=39 // pred_region
          %s1870 = sand.u32 %s108, 1
          %s1871 = scalar_lea.sflag [#allocation3], %s1870
          %s1872 = sand.u32 %s108, 1
          %s1873 = smul.addr %s1872, 16
          %s1874 = scalar_lea.vmem [#allocation2], %s1873
          %1876 = dma.done %s1871, 256
        $region44: #{tpu_custom_call.1} parent=39 // pred_fallthru
          _
      $region40: #{tpu_custom_call.1} parent=5 // pred_fallthru
        _
    $region6: #{tpu_custom_call.1} parent=1 // loop_footer
      %s16 = sadd.s32 1, %s12
    $region7: #{tpu_custom_call.1} parent=1 // loop_footer_branch
      %11 = sbr.rel target = $region3
    $region8: #{tpu_custom_call.1} parent=1 // loop_exit
      _
    %1877 = vsyncpa [#allocation3], 1
    %s1878 = scalar_lea.sflag [#allocation3], 1
    %1879 = vsyncpa %s1878, 1

</llo_original>
